<compile_context>
chip_gen: v5e
topology: v5e:2x2
jax: 0.10.0
libtpu: 0.0.40
codegen_flags: <defaults>
</compile_context>

<pallas_src>
import functools

import jax
import jax.numpy as jnp
from jax.experimental import pallas as pl
from jax.experimental.pallas import tpu as pltpu


def _attention_kernel(x_ref, wq_ref, wk_ref, wv_ref, wo_ref, bias_ref, o_ref, *,
                      heads, dim_head, bw, n_pad, dim):
    cd = x_ref.dtype                                   # MXU operand dtype (f32 or bf16)
    x = x_ref[...].reshape(bw * n_pad, dim)            # fused slab for the projections

    out_acc = None
    for h in range(heads):                             # small static loop over heads
        # Per-head QKV projections over the whole window block (large-M matmuls,
        # no lane slicing of a (N, 3D) buffer).
        q = jnp.dot(x, wq_ref[h], preferred_element_type=jnp.float32)
        k = jnp.dot(x, wk_ref[h], preferred_element_type=jnp.float32)
        v = jnp.dot(x, wv_ref[h], preferred_element_type=jnp.float32)
        q3 = q.astype(cd).reshape(bw, n_pad, dim_head)  # n_pad % 8 == 0 -> cheap reshape
        k3 = k.astype(cd).reshape(bw, n_pad, dim_head)
        v3 = v.astype(cd).reshape(bw, n_pad, dim_head)

        # Per-window attention, batched over the BW windows in this block.
        sim = jnp.einsum("bnd,bmd->bnm", q3, k3,
                         preferred_element_type=jnp.float32)
        sim = sim + bias_ref[h][None]                  # rel-pos bias (f32), padded cols = -1e9
        m = jnp.max(sim, axis=-1, keepdims=True)
        p = jnp.exp(sim - m)
        s = jnp.sum(p, axis=-1, keepdims=True)
        ctx = jnp.einsum("bnm,bmd->bnd", p.astype(cd), v3,
                         preferred_element_type=jnp.float32)
        ctx = ctx * pl.reciprocal(s, approx=True)      # normalize post-aggregation (EUP)

        # Accumulate this head's contribution to the output projection (no concat).
        contrib = jnp.dot(ctx.astype(cd).reshape(bw * n_pad, dim_head),
                          wo_ref[h], preferred_element_type=jnp.float32)
        out_acc = contrib if out_acc is None else out_acc + contrib

    o_ref[...] = out_acc.reshape(bw, n_pad, dim).astype(o_ref.dtype)


def _pick_block_windows(num_windows, max_block_windows):
    """Largest divisor of num_windows <= max_block_windows, preferring >= 2 grid steps
    so the grid can be sharded across TensorCores (v7x megacore)."""
    target = min(max_block_windows, num_windows)
    if num_windows >= 2:
        target = min(target, max(1, num_windows // 2))
    bw = max(1, target)
    while num_windows % bw:
        bw -= 1
    return bw


def attention_pallas(x, w_qkv, w_out, bias_hij, *, heads, dim_head,
                     max_block_windows=64, compute_dtype=None):
    """x: (b, X, Y, w1, w2, D) -> (b, X, Y, w1, w2, D)."""
    b, X, Y, w1, w2, D = x.shape
    assert D == heads * dim_head
    B = b * X * Y
    N = w1 * w2
    n_pad = ((N + 7) // 8) * 8              # sublane-multiple token count (49 -> 56)
    scale = dim_head ** (-0.5)

    # Per-head weights; fold the q scale into wq once on the host.
    wq = (w_qkv[:, :D] * scale).reshape(D, heads, dim_head).transpose(1, 0, 2)
    wk = w_qkv[:, D:2 * D].reshape(D, heads, dim_head).transpose(1, 0, 2)
    wv = w_qkv[:, 2 * D:].reshape(D, heads, dim_head).transpose(1, 0, 2)
    wo = w_out.reshape(heads, dim_head, D)

    x_flat = x.reshape(B, N, D)
    if n_pad != N:
        x_flat = jnp.pad(x_flat, ((0, 0), (0, n_pad - N), (0, 0)))
        bias_pad = jnp.full((heads, n_pad, n_pad), -1e9, jnp.float32)
        bias_pad = bias_pad.at[:, :N, :N].set(bias_hij.astype(jnp.float32))
    else:
        bias_pad = bias_hij.astype(jnp.float32)

    if compute_dtype is not None:           # bf16 MXU operands (v5e/v6e/v7x)
        x_flat = x_flat.astype(compute_dtype)
        wq, wk, wv, wo = (t.astype(compute_dtype) for t in (wq, wk, wv, wo))

    bw = _pick_block_windows(B, max_block_windows)
    grid = (B // bw,)

    kernel = functools.partial(_attention_kernel, heads=heads, dim_head=dim_head,
                               bw=bw, n_pad=n_pad, dim=D)

    out = pl.pallas_call(
        kernel,
        out_shape=jax.ShapeDtypeStruct((B, n_pad, D), x_flat.dtype),
        grid_spec=pltpu.PrefetchScalarGridSpec(
            num_scalar_prefetch=0,
            grid=grid,
            in_specs=[
                pl.BlockSpec((bw, n_pad, D), lambda i: (i, 0, 0)),         # x (BW windows)
                pl.BlockSpec((heads, D, dim_head), lambda i: (0, 0, 0)),   # wq (shared)
                pl.BlockSpec((heads, D, dim_head), lambda i: (0, 0, 0)),   # wk (shared)
                pl.BlockSpec((heads, D, dim_head), lambda i: (0, 0, 0)),   # wv (shared)
                pl.BlockSpec((heads, dim_head, D), lambda i: (0, 0, 0)),   # w_out (shared)
                pl.BlockSpec((heads, n_pad, n_pad), lambda i: (0, 0, 0)),  # bias (shared)
            ],
            out_specs=pl.BlockSpec((bw, n_pad, D), lambda i: (i, 0, 0)),
        ),
        compiler_params=pltpu.CompilerParams(
            dimension_semantics=("parallel",)),
    )(x_flat, wq, wk, wv, wo, bias_pad)

    out = out[:, :N, :].astype(x.dtype)
    return out.reshape(b, X, Y, w1, w2, D)


def make_rel_pos_bias(emb_weight, window_size):
    """emb_weight: ((2*ws-1)^2, H) -> (H, N, N) gathered relative-position bias."""
    pos = jnp.arange(window_size)
    gi, gj = jnp.meshgrid(pos, pos, indexing="ij")
    grid = jnp.stack([gi, gj], axis=-1).reshape(-1, 2)               # (N, 2)
    rel = grid[:, None, :] - grid[None, :, :] + (window_size - 1)    # (N, N, 2)
    idx = rel[..., 0] * (2 * window_size - 1) + rel[..., 1]          # (N, N)
    bias = emb_weight[idx]                                           # (N, N, H)
    return jnp.transpose(bias, (2, 0, 1))                            # (H, N, N)


def attention_reference(x, w_qkv, w_out, bias_hij, *, heads, dim_head):
    """Pure-JAX reference matching the PyTorch forward."""
    b, X, Y, w1, w2, D = x.shape
    B, N = b * X * Y, w1 * w2
    scale = dim_head ** (-0.5)
    xf = x.reshape(B, N, D)
    qkv = xf @ w_qkv                                                 # (B, N, 3D)
    q, k, v = jnp.split(qkv, 3, axis=-1)
    def split_heads(t):
        return jnp.transpose(t.reshape(B, N, heads, dim_head), (0, 2, 1, 3))
    q, k, v = map(split_heads, (q, k, v))
    q = q * scale
    sim = jnp.einsum("bhid,bhjd->bhij", q, k) + bias_hij[None]
    attn = jax.nn.softmax(sim, axis=-1)
    out = jnp.einsum("bhij,bhjd->bhid", attn, v)                     # (B, H, N, dh)
    out = jnp.transpose(out, (0, 2, 1, 3)).reshape(B, N, D)
    out = out @ w_out
    return out.reshape(b, X, Y, w1, w2, D)


if __name__ == "__main__":
    # Small shapes consistent with the module: window_size=7, dim=64, dim_head=32.
    batch, height, width = 2, 2, 2
    window_size = 7
    dim, dim_head = 64, 32
    heads = dim // dim_head

    key = jax.random.PRNGKey(0)
    kx, kqkv, kout, kemb = jax.random.split(key, 4)

    x = jax.random.normal(
        kx, (batch, height, width, window_size, window_size, dim), jnp.float32)
    # nn.Linear(dim, 3*dim, bias=False): store transposed weight (D, 3D).
    w_qkv = jax.random.normal(kqkv, (dim, 3 * dim), jnp.float32) * 0.05
    # nn.Linear(dim, dim, bias=False): transposed weight (D, D).
    w_out = jax.random.normal(kout, (dim, dim), jnp.float32) * 0.05
    # nn.Embedding((2*ws-1)^2, heads).weight
    emb_weight = jax.random.normal(
        kemb, ((2 * window_size - 1) ** 2, heads), jnp.float32) * 0.02
    bias_hij = make_rel_pos_bias(emb_weight, window_size)            # (H, N, N)

    out = attention_pallas(x, w_qkv, w_out, bias_hij,
                           heads=heads, dim_head=dim_head)
    out = jax.block_until_ready(out)

    ref = attention_reference(x, w_qkv, w_out, bias_hij,
                              heads=heads, dim_head=dim_head)
    assert out.shape == (batch, height, width, window_size, window_size, dim)
    # Tolerance accounts for the approximate (EUP) reciprocal in the softmax.
    assert jnp.allclose(out, ref, atol=2e-3, rtol=2e-3), "mismatch vs reference"

    # Dropout is identity in eval / with p=0.0, so nothing to do for nn.Dropout.
    print("KERNEL_OK")
</pallas_src>

<mosaic_0001>
module attributes {stable_mosaic.version = 11 : i64} {
  func.func @_attention_kernel(%arg0: i32, %arg1: memref<4x56x64xf32, #tpu.memory_space<vmem>>, %arg2: memref<2x64x32xf32, #tpu.memory_space<vmem>>, %arg3: memref<2x64x32xf32, #tpu.memory_space<vmem>>, %arg4: memref<2x64x32xf32, #tpu.memory_space<vmem>>, %arg5: memref<2x32x64xf32, #tpu.memory_space<vmem>>, %arg6: memref<2x56x56xf32, #tpu.memory_space<vmem>>, %arg7: memref<4x56x64xf32, #tpu.memory_space<vmem>>) attributes {dimension_semantics = [#tpu.dimension_semantics<parallel>], iteration_bounds = array<i64: 2>, scalar_prefetch = 0 : i64, scratch_operands = 0 : i64, tpu.core_type = #tpu.core_type<tc>, window_params = [{transform_indices = @transform_0, window_bounds = array<i64: 4, 56, 64>}, {pipeline_mode = #tpu.pipeline_mode<synchronous>, transform_indices = @transform_1, window_bounds = array<i64: 2, 64, 32>}, {pipeline_mode = #tpu.pipeline_mode<synchronous>, transform_indices = @transform_2, window_bounds = array<i64: 2, 64, 32>}, {pipeline_mode = #tpu.pipeline_mode<synchronous>, transform_indices = @transform_3, window_bounds = array<i64: 2, 64, 32>}, {pipeline_mode = #tpu.pipeline_mode<synchronous>, transform_indices = @transform_4, window_bounds = array<i64: 2, 32, 64>}, {pipeline_mode = #tpu.pipeline_mode<synchronous>, transform_indices = @transform_5, window_bounds = array<i64: 2, 56, 56>}, {transform_indices = @transform_6, window_bounds = array<i64: 4, 56, 64>}]} {
    %c0 = arith.constant 0 : index
    %c0_0 = arith.constant 0 : index
    %c0_1 = arith.constant 0 : index
    %0 = vector.load %arg1[%c0, %c0_0, %c0_1] : memref<4x56x64xf32, #tpu.memory_space<vmem>>, vector<4x56x64xf32>
    %1 = vector.shape_cast %0 : vector<4x56x64xf32> to vector<224x64xf32>
    %c0_2 = arith.constant 0 : index
    %c0_3 = arith.constant 0 : index
    %c0_4 = arith.constant 0 : index
    %2 = vector.load %arg2[%c0_2, %c0_3, %c0_4] : memref<2x64x32xf32, #tpu.memory_space<vmem>>, vector<1x64x32xf32>
    %3 = vector.shape_cast %2 : vector<1x64x32xf32> to vector<64x32xf32>
    %cst = arith.constant dense<0.000000e+00> : vector<224x32xf32>
    %4 = tpu.matmul %1, %3, %cst {dimension_numbers = #tpu.dot_dimension_numbers<[1], [0], [0], [1], [0, 0, 1, 1], [], []>} : vector<224x64xf32>, vector<64x32xf32>, vector<224x32xf32> -> vector<224x32xf32>
    %c0_5 = arith.constant 0 : index
    %c0_6 = arith.constant 0 : index
    %c0_7 = arith.constant 0 : index
    %5 = vector.load %arg3[%c0_5, %c0_6, %c0_7] : memref<2x64x32xf32, #tpu.memory_space<vmem>>, vector<1x64x32xf32>
    %6 = vector.shape_cast %5 : vector<1x64x32xf32> to vector<64x32xf32>
    %cst_8 = arith.constant dense<0.000000e+00> : vector<224x32xf32>
    %7 = tpu.matmul %1, %6, %cst_8 {dimension_numbers = #tpu.dot_dimension_numbers<[1], [0], [0], [1], [0, 0, 1, 1], [], []>} : vector<224x64xf32>, vector<64x32xf32>, vector<224x32xf32> -> vector<224x32xf32>
    %c0_9 = arith.constant 0 : index
    %c0_10 = arith.constant 0 : index
    %c0_11 = arith.constant 0 : index
    %8 = vector.load %arg4[%c0_9, %c0_10, %c0_11] : memref<2x64x32xf32, #tpu.memory_space<vmem>>, vector<1x64x32xf32>
    %9 = vector.shape_cast %8 : vector<1x64x32xf32> to vector<64x32xf32>
    %cst_12 = arith.constant dense<0.000000e+00> : vector<224x32xf32>
    %10 = tpu.matmul %1, %9, %cst_12 {dimension_numbers = #tpu.dot_dimension_numbers<[1], [0], [0], [1], [0, 0, 1, 1], [], []>} : vector<224x64xf32>, vector<64x32xf32>, vector<224x32xf32> -> vector<224x32xf32>
    %11 = vector.shape_cast %4 : vector<224x32xf32> to vector<4x56x32xf32>
    %12 = vector.shape_cast %7 : vector<224x32xf32> to vector<4x56x32xf32>
    %13 = vector.shape_cast %10 : vector<224x32xf32> to vector<4x56x32xf32>
    "tpu.trace_start"() <{level = 10 : i32, message = "bnd,bmd->bnm"}> : () -> ()
    %cst_13 = arith.constant dense<0.000000e+00> : vector<4x56x56xf32>
    %14 = tpu.matmul %11, %12, %cst_13 {dimension_numbers = #tpu.dot_dimension_numbers<[2], [2], [1], [1], [0, 0, 0, 1, 1, 1], [0], [0]>} : vector<4x56x32xf32>, vector<4x56x32xf32>, vector<4x56x56xf32> -> vector<4x56x56xf32>
    "tpu.trace_stop"() : () -> ()
    %c0_14 = arith.constant 0 : index
    %c0_15 = arith.constant 0 : index
    %c0_16 = arith.constant 0 : index
    %15 = vector.load %arg6[%c0_14, %c0_15, %c0_16] : memref<2x56x56xf32, #tpu.memory_space<vmem>>, vector<1x56x56xf32>
    %16 = vector.shape_cast %15 : vector<1x56x56xf32> to vector<56x56xf32>
    %17 = vector.shape_cast %16 : vector<56x56xf32> to vector<1x56x56xf32>
    %18 = vector.broadcast %17 : vector<1x56x56xf32> to vector<4x56x56xf32>
    %19 = arith.addf %14, %18 : vector<4x56x56xf32>
    %cst_17 = arith.constant dense<0xFF800000> : vector<4x56xf32>
    %20 = vector.multi_reduction <maximumf>, %19, %cst_17 [2] : vector<4x56x56xf32> to vector<4x56xf32>
    %21 = vector.shape_cast %20 : vector<4x56xf32> to vector<4x56x1xf32>
    %22 = vector.broadcast %21 : vector<4x56x1xf32> to vector<4x56x56xf32>
    %23 = arith.subf %19, %22 : vector<4x56x56xf32>
    %24 = math.exp %23 : vector<4x56x56xf32>
    %cst_18 = arith.constant dense<0.000000e+00> : vector<4x56xf32>
    %25 = vector.multi_reduction <add>, %24, %cst_18 [2] : vector<4x56x56xf32> to vector<4x56xf32>
    %26 = vector.shape_cast %25 : vector<4x56xf32> to vector<4x56x1xf32>
    "tpu.trace_start"() <{level = 10 : i32, message = "bnm,bmd->bnd"}> : () -> ()
    %cst_19 = arith.constant dense<0.000000e+00> : vector<4x56x32xf32>
    %27 = tpu.matmul %24, %13, %cst_19 {dimension_numbers = #tpu.dot_dimension_numbers<[2], [1], [1], [2], [0, 0, 0, 1, 1, 2], [0], [0]>} : vector<4x56x56xf32>, vector<4x56x32xf32>, vector<4x56x32xf32> -> vector<4x56x32xf32>
    "tpu.trace_stop"() : () -> ()
    %28 = tpu.reciprocal %26 {approx = true} : vector<4x56x1xf32> -> vector<4x56x1xf32>
    %29 = vector.broadcast %28 : vector<4x56x1xf32> to vector<4x56x32xf32>
    %30 = arith.mulf %27, %29 : vector<4x56x32xf32>
    %31 = vector.shape_cast %30 : vector<4x56x32xf32> to vector<224x32xf32>
    %c0_20 = arith.constant 0 : index
    %c0_21 = arith.constant 0 : index
    %c0_22 = arith.constant 0 : index
    %32 = vector.load %arg5[%c0_20, %c0_21, %c0_22] : memref<2x32x64xf32, #tpu.memory_space<vmem>>, vector<1x32x64xf32>
    %33 = vector.shape_cast %32 : vector<1x32x64xf32> to vector<32x64xf32>
    %cst_23 = arith.constant dense<0.000000e+00> : vector<224x64xf32>
    %34 = tpu.matmul %31, %33, %cst_23 {dimension_numbers = #tpu.dot_dimension_numbers<[1], [0], [0], [1], [0, 0, 1, 1], [], []>} : vector<224x32xf32>, vector<32x64xf32>, vector<224x64xf32> -> vector<224x64xf32>
    %c1 = arith.constant 1 : index
    %c0_24 = arith.constant 0 : index
    %c0_25 = arith.constant 0 : index
    %35 = vector.load %arg2[%c1, %c0_24, %c0_25] : memref<2x64x32xf32, #tpu.memory_space<vmem>>, vector<1x64x32xf32>
    %36 = vector.shape_cast %35 : vector<1x64x32xf32> to vector<64x32xf32>
    %cst_26 = arith.constant dense<0.000000e+00> : vector<224x32xf32>
    %37 = tpu.matmul %1, %36, %cst_26 {dimension_numbers = #tpu.dot_dimension_numbers<[1], [0], [0], [1], [0, 0, 1, 1], [], []>} : vector<224x64xf32>, vector<64x32xf32>, vector<224x32xf32> -> vector<224x32xf32>
    %c1_27 = arith.constant 1 : index
    %c0_28 = arith.constant 0 : index
    %c0_29 = arith.constant 0 : index
    %38 = vector.load %arg3[%c1_27, %c0_28, %c0_29] : memref<2x64x32xf32, #tpu.memory_space<vmem>>, vector<1x64x32xf32>
    %39 = vector.shape_cast %38 : vector<1x64x32xf32> to vector<64x32xf32>
    %cst_30 = arith.constant dense<0.000000e+00> : vector<224x32xf32>
    %40 = tpu.matmul %1, %39, %cst_30 {dimension_numbers = #tpu.dot_dimension_numbers<[1], [0], [0], [1], [0, 0, 1, 1], [], []>} : vector<224x64xf32>, vector<64x32xf32>, vector<224x32xf32> -> vector<224x32xf32>
    %c1_31 = arith.constant 1 : index
    %c0_32 = arith.constant 0 : index
    %c0_33 = arith.constant 0 : index
    %41 = vector.load %arg4[%c1_31, %c0_32, %c0_33] : memref<2x64x32xf32, #tpu.memory_space<vmem>>, vector<1x64x32xf32>
    %42 = vector.shape_cast %41 : vector<1x64x32xf32> to vector<64x32xf32>
    %cst_34 = arith.constant dense<0.000000e+00> : vector<224x32xf32>
    %43 = tpu.matmul %1, %42, %cst_34 {dimension_numbers = #tpu.dot_dimension_numbers<[1], [0], [0], [1], [0, 0, 1, 1], [], []>} : vector<224x64xf32>, vector<64x32xf32>, vector<224x32xf32> -> vector<224x32xf32>
    %44 = vector.shape_cast %37 : vector<224x32xf32> to vector<4x56x32xf32>
    %45 = vector.shape_cast %40 : vector<224x32xf32> to vector<4x56x32xf32>
    %46 = vector.shape_cast %43 : vector<224x32xf32> to vector<4x56x32xf32>
    "tpu.trace_start"() <{level = 10 : i32, message = "bnd,bmd->bnm"}> : () -> ()
    %cst_35 = arith.constant dense<0.000000e+00> : vector<4x56x56xf32>
    %47 = tpu.matmul %44, %45, %cst_35 {dimension_numbers = #tpu.dot_dimension_numbers<[2], [2], [1], [1], [0, 0, 0, 1, 1, 1], [0], [0]>} : vector<4x56x32xf32>, vector<4x56x32xf32>, vector<4x56x56xf32> -> vector<4x56x56xf32>
    "tpu.trace_stop"() : () -> ()
    %c1_36 = arith.constant 1 : index
    %c0_37 = arith.constant 0 : index
    %c0_38 = arith.constant 0 : index
    %48 = vector.load %arg6[%c1_36, %c0_37, %c0_38] : memref<2x56x56xf32, #tpu.memory_space<vmem>>, vector<1x56x56xf32>
    %49 = vector.shape_cast %48 : vector<1x56x56xf32> to vector<56x56xf32>
    %50 = vector.shape_cast %49 : vector<56x56xf32> to vector<1x56x56xf32>
    %51 = vector.broadcast %50 : vector<1x56x56xf32> to vector<4x56x56xf32>
    %52 = arith.addf %47, %51 : vector<4x56x56xf32>
    %cst_39 = arith.constant dense<0xFF800000> : vector<4x56xf32>
    %53 = vector.multi_reduction <maximumf>, %52, %cst_39 [2] : vector<4x56x56xf32> to vector<4x56xf32>
    %54 = vector.shape_cast %53 : vector<4x56xf32> to vector<4x56x1xf32>
    %55 = vector.broadcast %54 : vector<4x56x1xf32> to vector<4x56x56xf32>
    %56 = arith.subf %52, %55 : vector<4x56x56xf32>
    %57 = math.exp %56 : vector<4x56x56xf32>
    %cst_40 = arith.constant dense<0.000000e+00> : vector<4x56xf32>
    %58 = vector.multi_reduction <add>, %57, %cst_40 [2] : vector<4x56x56xf32> to vector<4x56xf32>
    %59 = vector.shape_cast %58 : vector<4x56xf32> to vector<4x56x1xf32>
    "tpu.trace_start"() <{level = 10 : i32, message = "bnm,bmd->bnd"}> : () -> ()
    %cst_41 = arith.constant dense<0.000000e+00> : vector<4x56x32xf32>
    %60 = tpu.matmul %57, %46, %cst_41 {dimension_numbers = #tpu.dot_dimension_numbers<[2], [1], [1], [2], [0, 0, 0, 1, 1, 2], [0], [0]>} : vector<4x56x56xf32>, vector<4x56x32xf32>, vector<4x56x32xf32> -> vector<4x56x32xf32>
    "tpu.trace_stop"() : () -> ()
    %61 = tpu.reciprocal %59 {approx = true} : vector<4x56x1xf32> -> vector<4x56x1xf32>
    %62 = vector.broadcast %61 : vector<4x56x1xf32> to vector<4x56x32xf32>
    %63 = arith.mulf %60, %62 : vector<4x56x32xf32>
    %64 = vector.shape_cast %63 : vector<4x56x32xf32> to vector<224x32xf32>
    %c1_42 = arith.constant 1 : index
    %c0_43 = arith.constant 0 : index
    %c0_44 = arith.constant 0 : index
    %65 = vector.load %arg5[%c1_42, %c0_43, %c0_44] : memref<2x32x64xf32, #tpu.memory_space<vmem>>, vector<1x32x64xf32>
    %66 = vector.shape_cast %65 : vector<1x32x64xf32> to vector<32x64xf32>
    %cst_45 = arith.constant dense<0.000000e+00> : vector<224x64xf32>
    %67 = tpu.matmul %64, %66, %cst_45 {dimension_numbers = #tpu.dot_dimension_numbers<[1], [0], [0], [1], [0, 0, 1, 1], [], []>} : vector<224x32xf32>, vector<32x64xf32>, vector<224x64xf32> -> vector<224x64xf32>
    %68 = arith.addf %34, %67 : vector<224x64xf32>
    %69 = vector.shape_cast %68 : vector<224x64xf32> to vector<4x56x64xf32>
    %c0_46 = arith.constant 0 : index
    %c0_47 = arith.constant 0 : index
    %c0_48 = arith.constant 0 : index
    %70 = vector.load %arg7[%c0_46, %c0_47, %c0_48] : memref<4x56x64xf32, #tpu.memory_space<vmem>>, vector<4x56x64xf32>
    tpu.vector_store %arg7[%c0_46, %c0_47, %c0_48], %69 {strides = array<i32>} : memref<4x56x64xf32, #tpu.memory_space<vmem>>, vector<4x56x64xf32>,
    return
  }
  func.func @transform_0(%arg0: i32) -> (i32, i32, i32) {
    %c0_i32 = arith.constant 0 : i32
    %c0_i32_0 = arith.constant 0 : i32
    %c0_i32_1 = arith.constant 0 : i32
    return %arg0, %c0_i32, %c0_i32_0 : i32, i32, i32
  }
  func.func @transform_1(%arg0: i32) -> (i32, i32, i32) {
    %c0_i32 = arith.constant 0 : i32
    %c0_i32_0 = arith.constant 0 : i32
    %c0_i32_1 = arith.constant 0 : i32
    %c0_i32_2 = arith.constant 0 : i32
    return %c0_i32, %c0_i32_0, %c0_i32_1 : i32, i32, i32
  }
  func.func @transform_2(%arg0: i32) -> (i32, i32, i32) {
    %c0_i32 = arith.constant 0 : i32
    %c0_i32_0 = arith.constant 0 : i32
    %c0_i32_1 = arith.constant 0 : i32
    %c0_i32_2 = arith.constant 0 : i32
    return %c0_i32, %c0_i32_0, %c0_i32_1 : i32, i32, i32
  }
  func.func @transform_3(%arg0: i32) -> (i32, i32, i32) {
    %c0_i32 = arith.constant 0 : i32
    %c0_i32_0 = arith.constant 0 : i32
    %c0_i32_1 = arith.constant 0 : i32
    %c0_i32_2 = arith.constant 0 : i32
    return %c0_i32, %c0_i32_0, %c0_i32_1 : i32, i32, i32
  }
  func.func @transform_4(%arg0: i32) -> (i32, i32, i32) {
    %c0_i32 = arith.constant 0 : i32
    %c0_i32_0 = arith.constant 0 : i32
    %c0_i32_1 = arith.constant 0 : i32
    %c0_i32_2 = arith.constant 0 : i32
    return %c0_i32, %c0_i32_0, %c0_i32_1 : i32, i32, i32
  }
  func.func @transform_5(%arg0: i32) -> (i32, i32, i32) {
    %c0_i32 = arith.constant 0 : i32
    %c0_i32_0 = arith.constant 0 : i32
    %c0_i32_1 = arith.constant 0 : i32
    %c0_i32_2 = arith.constant 0 : i32
    return %c0_i32, %c0_i32_0, %c0_i32_1 : i32, i32, i32
  }
  func.func @transform_6(%arg0: i32) -> (i32, i32, i32) {
    %c0_i32 = arith.constant 0 : i32
    %c0_i32_0 = arith.constant 0 : i32
    %c0_i32_1 = arith.constant 0 : i32
    return %arg0, %c0_i32, %c0_i32_0 : i32, i32, i32
  }
}

</mosaic_0001>

<llo_original>
// kernel: tpu_custom_call.1
$region0: #{tpu_custom_call.1}
  #allocation0 [shape = 'u32[]', space=smem, size = 0x4, offset = 0x4, fixed_abs, tag = 'smem constant byte address 0x4 - core index']
  #allocation1 [shape = 'u32[72,128]{1,0:T(1,128)}', space=vmem, size = 0x9000, scoped, tag = 'internal scratch']
  %s0 = inlined_call_operand.hbm [shape: f32[8,56,64], index: 0, kind: input, shape index: {}]
  %s1 = inlined_call_operand.vmem [shape: f32[2,64,32], index: 1, kind: input, shape index: {}]
  %s2 = inlined_call_operand.vmem [shape: f32[2,64,32], index: 2, kind: input, shape index: {}]
  %s3 = inlined_call_operand.vmem [shape: f32[2,64,32], index: 3, kind: input, shape index: {}]
  %s4 = inlined_call_operand.vmem [shape: f32[2,32,64], index: 4, kind: input, shape index: {}]
  %s5 = inlined_call_operand.vmem [shape: f32[2,56,56], index: 5, kind: input, shape index: {}]
  %s6 = inlined_call_operand.hbm [shape: f32[8,56,64], index: 6, kind: output, shape index: {}]
  %s7 = sld [smem:[#allocation0]]
  $region61: #{tpu_custom_call.1} parent=0
    _
  %s9 = ssub.s32 1, %s7
  %s10 = scalar_select 0, %s9, %s7
  $region1: #{tpu_custom_call.1} parent=0
    #allocation2 [shape = 'u8[229376]{0}', space=vmem, size = 0x38000, scoped, tag = 'input window, operand 0']
    #allocation3 [shape = 's32[2]{0}', space=sflag, size = 0x8, scoped, tag = 'scoped memory for tpu_custom_call.1']
    #allocation4 [shape = 's32[2]{0}', space=sflag, size = 0x8, scoped, tag = 'scoped memory for tpu_custom_call.1']
    #allocation5 [shape = 'u8[229376]{0}', space=vmem, size = 0x38000, scoped, tag = 'output window, operand 0']
    %11 = vsyncpa [#allocation3], 0
    %s12 = scalar_lea.sflag [#allocation3], 1
    %13 = vsyncpa %s12, 0
    %14 = vsyncpa [#allocation4], 0
    %s15 = scalar_lea.sflag [#allocation4], 1
    %16 = vsyncpa %s15, 0
    loop: start=0, step=1, limit=4
    $region2: #{tpu_custom_call.1} parent=1 // loop_pre_header
      _
    $region3: #{tpu_custom_call.1} parent=1 // loop_header
      %s18 = sphi 0, %s22
      %p19 = scmp.ge.s32.totalorder %s18, 4
      %s28 = sphi 0, %s30
      %s31 = sphi 0, %s28
      %s32 = sphi 0, %s31
      %s48 = sphi 0, %s32
      %s52 = sphi 0, %s52
      %s54 = sphi 0, %s52
      %s55 = sphi 0, %s54
      %s69 = sphi 0, %s55
      %s73 = sphi 0, %s73
      %s75 = sphi 0, %s73
      %s76 = sphi 0, %s75
      %s90 = sphi 0, %s76
      %s94 = sphi 0, %s94
      %s96 = sphi 0, %s94
      %s97 = sphi 0, %s96
      %s111 = sphi 0, %s97
      %s115 = sphi 0, %s115
      %s117 = sphi 0, %s115
      %s118 = sphi 0, %s117
      %s132 = sphi 0, %s118
      %s136 = sphi 0, %s136
      %s138 = sphi 0, %s136
      %s139 = sphi 0, %s138
      %s153 = sphi 0, %s139
      %s159 = sphi 0, %s161
      %s162 = sphi 0, %s159
      %s163 = sphi 0, %s162
      %s179 = sphi 0, %s163
    $region4: #{tpu_custom_call.1} parent=1 // loop_header_branch
      %21 = sbr.rel (%p19) target = $region8
    $region5: #{tpu_custom_call.1} parent=1 // loop_body
      %s23 = ssub.s32 %s18, 1
      %s24 = ssub.s32 %s18, 2
      %s25 = sadd.s32 %s18, 1
      %s26 = ssub.s32 %s18, %s25
      %p27 = scmp.eq.s32.totalorder %s26, 0
      %s29 = sadd.s32 %s28, 1
      %s30 = scalar_select %p27, %s28, %s29
      %p33 = pneg %p27
      %p34 = scmp.eq.s32.totalorder %s18, 1
      %p35 = por %p33, %p34
      %p36 = scmp.ne.s32.totalorder %s28, %s31
      %p37 = scmp.eq.s32.totalorder %s18, 0
      %p38 = por %p36, %p37
      %p39 = scmp.ne.s32.totalorder %s28, %s31
      %p40 = scmp.eq.s32.totalorder %s23, 1
      %p41 = por %p39, %p40
      %p42 = scmp.ne.s32.totalorder %s31, %s32
      %p43 = scmp.eq.s32.totalorder %s23, 0
      %p44 = por %p42, %p43
      %p45 = scmp.ne.s32.totalorder %s31, %s32
      %p46 = scmp.eq.s32.totalorder %s24, 1
      %p47 = por %p45, %p46
      %p49 = scmp.ne.s32.totalorder %s32, %s48
      %p50 = scmp.eq.s32.totalorder %s24, 0
      %p51 = por %p49, %p50
      %s53 = sadd.s32 %s52, 1
      %p56 = scmp.eq.s32.totalorder %s18, 1
      %p57 = scmp.ne.s32.totalorder %s52, %s54
      %p58 = scmp.eq.s32.totalorder %s18, 0
      %p59 = por %p57, %p58
      %p60 = scmp.ne.s32.totalorder %s52, %s54
      %p61 = scmp.eq.s32.totalorder %s23, 1
      %p62 = por %p60, %p61
      %p63 = scmp.ne.s32.totalorder %s54, %s55
      %p64 = scmp.eq.s32.totalorder %s23, 0
      %p65 = por %p63, %p64
      %p66 = scmp.ne.s32.totalorder %s54, %s55
      %p67 = scmp.eq.s32.totalorder %s24, 1
      %p68 = por %p66, %p67
      %p70 = scmp.ne.s32.totalorder %s55, %s69
      %p71 = scmp.eq.s32.totalorder %s24, 0
      %p72 = por %p70, %p71
      %s74 = sadd.s32 %s73, 1
      %p77 = scmp.eq.s32.totalorder %s18, 1
      %p78 = scmp.ne.s32.totalorder %s73, %s75
      %p79 = scmp.eq.s32.totalorder %s18, 0
      %p80 = por %p78, %p79
      %p81 = scmp.ne.s32.totalorder %s73, %s75
      %p82 = scmp.eq.s32.totalorder %s23, 1
      %p83 = por %p81, %p82
      %p84 = scmp.ne.s32.totalorder %s75, %s76
      %p85 = scmp.eq.s32.totalorder %s23, 0
      %p86 = por %p84, %p85
      %p87 = scmp.ne.s32.totalorder %s75, %s76
      %p88 = scmp.eq.s32.totalorder %s24, 1
      %p89 = por %p87, %p88
      %p91 = scmp.ne.s32.totalorder %s76, %s90
      %p92 = scmp.eq.s32.totalorder %s24, 0
      %p93 = por %p91, %p92
      %s95 = sadd.s32 %s94, 1
      %p98 = scmp.eq.s32.totalorder %s18, 1
      %p99 = scmp.ne.s32.totalorder %s94, %s96
      %p100 = scmp.eq.s32.totalorder %s18, 0
      %p101 = por %p99, %p100
      %p102 = scmp.ne.s32.totalorder %s94, %s96
      %p103 = scmp.eq.s32.totalorder %s23, 1
      %p104 = por %p102, %p103
      %p105 = scmp.ne.s32.totalorder %s96, %s97
      %p106 = scmp.eq.s32.totalorder %s23, 0
      %p107 = por %p105, %p106
      %p108 = scmp.ne.s32.totalorder %s96, %s97
      %p109 = scmp.eq.s32.totalorder %s24, 1
      %p110 = por %p108, %p109
      %p112 = scmp.ne.s32.totalorder %s97, %s111
      %p113 = scmp.eq.s32.totalorder %s24, 0
      %p114 = por %p112, %p113
      %s116 = sadd.s32 %s115, 1
      %p119 = scmp.eq.s32.totalorder %s18, 1
      %p120 = scmp.ne.s32.totalorder %s115, %s117
      %p121 = scmp.eq.s32.totalorder %s18, 0
      %p122 = por %p120, %p121
      %p123 = scmp.ne.s32.totalorder %s115, %s117
      %p124 = scmp.eq.s32.totalorder %s23, 1
      %p125 = por %p123, %p124
      %p126 = scmp.ne.s32.totalorder %s117, %s118
      %p127 = scmp.eq.s32.totalorder %s23, 0
      %p128 = por %p126, %p127
      %p129 = scmp.ne.s32.totalorder %s117, %s118
      %p130 = scmp.eq.s32.totalorder %s24, 1
      %p131 = por %p129, %p130
      %p133 = scmp.ne.s32.totalorder %s118, %s132
      %p134 = scmp.eq.s32.totalorder %s24, 0
      %p135 = por %p133, %p134
      %s137 = sadd.s32 %s136, 1
      %p140 = scmp.eq.s32.totalorder %s18, 1
      %p141 = scmp.ne.s32.totalorder %s136, %s138
      %p142 = scmp.eq.s32.totalorder %s18, 0
      %p143 = por %p141, %p142
      %p144 = scmp.ne.s32.totalorder %s136, %s138
      %p145 = scmp.eq.s32.totalorder %s23, 1
      %p146 = por %p144, %p145
      %p147 = scmp.ne.s32.totalorder %s138, %s139
      %p148 = scmp.eq.s32.totalorder %s23, 0
      %p149 = por %p147, %p148
      %p150 = scmp.ne.s32.totalorder %s138, %s139
      %p151 = scmp.eq.s32.totalorder %s24, 1
      %p152 = por %p150, %p151
      %p154 = scmp.ne.s32.totalorder %s139, %s153
      %p155 = scmp.eq.s32.totalorder %s24, 0
      %p156 = por %p154, %p155
      %s157 = ssub.s32 %s18, %s25
      %p158 = scmp.eq.s32.totalorder %s157, 0
      %s160 = sadd.s32 %s159, 1
      %s161 = scalar_select %p158, %s159, %s160
      %p164 = pneg %p158
      %p165 = scmp.eq.s32.totalorder %s18, 1
      %p166 = por %p164, %p165
      %p167 = scmp.ne.s32.totalorder %s159, %s162
      %p168 = scmp.eq.s32.totalorder %s18, 0
      %p169 = por %p167, %p168
      %p170 = scmp.ne.s32.totalorder %s159, %s162
      %p171 = scmp.eq.s32.totalorder %s23, 1
      %p172 = por %p170, %p171
      %p173 = scmp.ne.s32.totalorder %s162, %s163
      %p174 = scmp.eq.s32.totalorder %s23, 0
      %p175 = por %p173, %p174
      %p176 = scmp.ne.s32.totalorder %s162, %s163
      %p177 = scmp.eq.s32.totalorder %s24, 1
      %p178 = por %p176, %p177
      %p180 = scmp.ne.s32.totalorder %s163, %s179
      %p181 = scmp.eq.s32.totalorder %s24, 0
      %p182 = por %p180, %p181
      %p183 = scmp.le.s32.totalorder 1, %s18
      %p184 = scmp.lt.s32.totalorder %s18, 3
      %p185 = pnand %p183, %p184
      %p186 = pneg %p185
      // Predicated region
      $region9: #{tpu_custom_call.1} parent=5 // pred_check
        _
      $region10: #{tpu_custom_call.1} parent=5 // pred_check_branch
        %188 = sbr.rel (%p185) target = $region12
      $region11: #{tpu_custom_call.1} parent=5 // pred_region
        %s189 = ssub.s32 %s18, 1
        // Predicated region
        $region13: #{tpu_custom_call.1} parent=11 // pred_check
          %p190 = pneg %p65
        $region14: #{tpu_custom_call.1} parent=11 // pred_check_branch
          %192 = sbr.rel (%p190) target = $region16
        $region15: #{tpu_custom_call.1} parent=11 // pred_region
          _
        $region16: #{tpu_custom_call.1} parent=11 // pred_fallthru
          _
        // Predicated region
        $region17: #{tpu_custom_call.1} parent=11 // pred_check
          %p193 = pneg %p86
        $region18: #{tpu_custom_call.1} parent=11 // pred_check_branch
          %195 = sbr.rel (%p193) target = $region20
        $region19: #{tpu_custom_call.1} parent=11 // pred_region
          _
        $region20: #{tpu_custom_call.1} parent=11 // pred_fallthru
          _
        // Predicated region
        $region21: #{tpu_custom_call.1} parent=11 // pred_check
          %p196 = pneg %p107
        $region22: #{tpu_custom_call.1} parent=11 // pred_check_branch
          %198 = sbr.rel (%p196) target = $region24
        $region23: #{tpu_custom_call.1} parent=11 // pred_region
          _
        $region24: #{tpu_custom_call.1} parent=11 // pred_fallthru
          _
        // Predicated region
        $region25: #{tpu_custom_call.1} parent=11 // pred_check
          %p199 = pneg %p128
        $region26: #{tpu_custom_call.1} parent=11 // pred_check_branch
          %201 = sbr.rel (%p199) target = $region28
        $region27: #{tpu_custom_call.1} parent=11 // pred_region
          _
        $region28: #{tpu_custom_call.1} parent=11 // pred_fallthru
          _
        // Predicated region
        $region29: #{tpu_custom_call.1} parent=11 // pred_check
          %p202 = pneg %p149
        $region30: #{tpu_custom_call.1} parent=11 // pred_check_branch
          %204 = sbr.rel (%p202) target = $region32
        $region31: #{tpu_custom_call.1} parent=11 // pred_region
          _
        $region32: #{tpu_custom_call.1} parent=11 // pred_fallthru
          _
      $region12: #{tpu_custom_call.1} parent=5 // pred_fallthru
        _
      %p205 = scmp.lt.s32.totalorder %s18, 2
      // Predicated region
      $region33: #{tpu_custom_call.1} parent=5 // pred_check
        %p206 = pneg %p205
      $region34: #{tpu_custom_call.1} parent=5 // pred_check_branch
        %208 = sbr.rel (%p206) target = $region36
      $region35: #{tpu_custom_call.1} parent=5 // pred_region
        // Predicated region
        $region37: #{tpu_custom_call.1} parent=35 // pred_check
          %p209 = pneg %p38
        $region38: #{tpu_custom_call.1} parent=35 // pred_check_branch
          %211 = sbr.rel (%p209) target = $region40
        $region39: #{tpu_custom_call.1} parent=35 // pred_region
          %s212 = sand.u32 %s28, 1
          %s213 = scalar_lea.sflag [#allocation3], %s212
          %s214 = sand.u32 %s28, 1
          %s215 = smul.addr %s214, 224
          %s216 = scalar_lea.vmem [#allocation2], %s215
          %s217 = smul.u32 4, %s18
          %219 = vsyncadd %s213, 0
          %s220 = smul.addr %s217, 7
          %s221 = smul.addr %s220, 8
          %s222 = scalar_lea.hbm %s0, %s221
          %s223 = sshll.u32 %s222, 4
          %s224 = int_to_ptr.hbm [resolvable:$true] %s223
          %s225 = sshll.u32 %s216, 4
          %s226 = int_to_ptr.vmem [resolvable:$true] %s225
          %231 = dma.hbm_to_vmem [thread:$0]  %s224, 3584, %s226, %s213, 128, 128, 8
        $region40: #{tpu_custom_call.1} parent=35 // pred_fallthru
          _
      $region36: #{tpu_custom_call.1} parent=5 // pred_fallthru
        _
      %p232 = scmp.le.s32.totalorder 1, %s18
      %p233 = scmp.lt.s32.totalorder %s18, 3
      %p234 = pnand %p232, %p233
      %p235 = pneg %p234
      // Predicated region
      $region41: #{tpu_custom_call.1} parent=5 // pred_check
        _
      $region42: #{tpu_custom_call.1} parent=5 // pred_check_branch
        %237 = sbr.rel (%p234) target = $region44
      $region43: #{tpu_custom_call.1} parent=5 // pred_region
        %s238 = ssub.s32 %s18, 1
        %s239 = sand.u32 %s31, 1
        %s240 = scalar_lea.sflag [#allocation3], %s239
        %s241 = sand.u32 %s31, 1
        %s242 = smul.addr %s241, 224
        %s243 = scalar_lea.vmem [#allocation2], %s242
        // Predicated region
        $region45: #{tpu_custom_call.1} parent=43 // pred_check
          %p244 = pneg %p44
        $region46: #{tpu_custom_call.1} parent=43 // pred_check_branch
          %246 = sbr.rel (%p244) target = $region48
        $region47: #{tpu_custom_call.1} parent=43 // pred_region
          %248 = dma.done %s240, 3584
        $region48: #{tpu_custom_call.1} parent=43 // pred_fallthru
          _
        %s249 = sand.u32 %s31, 1
        %s250 = scalar_lea.sflag [#allocation3], %s249
        %s251 = sand.u32 %s31, 1
        %s252 = smul.addr %s251, 224
        %s253 = scalar_lea.vmem [#allocation2], %s252
        %p254 = pneg %p44
        %p255 = pneg %p41
        %p256 = pneg %p65
        %p257 = pneg %p62
        %p258 = pneg %p86
        %p259 = pneg %p83
        %p260 = pneg %p107
        %p261 = pneg %p104
        %p262 = pneg %p128
        %p263 = pneg %p125
        %p264 = pneg %p149
        %p265 = pneg %p146
        %p266 = pneg %p175
        %p267 = pneg %p172
        %s268 = sand.u32 %s162, 1
        %s269 = scalar_lea.sflag [#allocation4], %s268
        %s270 = sand.u32 %s162, 1
        %s271 = smul.addr %s270, 224
        %s272 = scalar_lea.vmem [#allocation5], %s271
        %s273 = smul.u32 4, %s23
        %s274 = smul.u32 4, %s23
        %v275 = vld [vmem:[%s243] sm:$0xff]
        %v276 = vld [vmem:[%s243 + $0x8] sm:$0xff]
        %v277 = vld [vmem:[%s243 + $0x10] sm:$0xff]
        %v278 = vld [vmem:[%s243 + $0x18] sm:$0xff]
        %v279 = vld [vmem:[%s243 + $0x20] sm:$0xff]
        %v280 = vld [vmem:[%s243 + $0x28] sm:$0xff]
        %v281 = vld [vmem:[%s243 + $0x30] sm:$0xff]
        %v282 = vld [vmem:[%s243 + $0x38] sm:$0xff]
        %v283 = vld [vmem:[%s243 + $0x40] sm:$0xff]
        %v284 = vld [vmem:[%s243 + $0x48] sm:$0xff]
        %v285 = vld [vmem:[%s243 + $0x50] sm:$0xff]
        %v286 = vld [vmem:[%s243 + $0x58] sm:$0xff]
        %v287 = vld [vmem:[%s243 + $0x60] sm:$0xff]
        %v288 = vld [vmem:[%s243 + $0x68] sm:$0xff]
        %v289 = vld [vmem:[%s243 + $0x70] sm:$0xff]
        %v290 = vld [vmem:[%s243 + $0x78] sm:$0xff]
        %v291 = vld [vmem:[%s243 + $0x80] sm:$0xff]
        %v292 = vld [vmem:[%s243 + $0x88] sm:$0xff]
        %v293 = vld [vmem:[%s243 + $0x90] sm:$0xff]
        %v294 = vld [vmem:[%s243 + $0x98] sm:$0xff]
        %v295 = vld [vmem:[%s243 + $0xa0] sm:$0xff]
        %v296 = vld [vmem:[%s243 + $0xa8] sm:$0xff]
        %v297 = vld [vmem:[%s243 + $0xb0] sm:$0xff]
        %v298 = vld [vmem:[%s243 + $0xb8] sm:$0xff]
        %v299 = vld [vmem:[%s243 + $0xc0] sm:$0xff]
        %v300 = vld [vmem:[%s243 + $0xc8] sm:$0xff]
        %v301 = vld [vmem:[%s243 + $0xd0] sm:$0xff]
        %v302 = vld [vmem:[%s243 + $0xd8] sm:$0xff]
        %v303 = vld [vmem:[%s1] sm:$0xff]
        %v304 = vld [vmem:[%s1 + $0x8] sm:$0xff]
        %v305 = vld [vmem:[%s1 + $0x10] sm:$0xff]
        %v306 = vld [vmem:[%s1 + $0x18] sm:$0xff]
        %v307 = vld [vmem:[%s1 + $0x20] sm:$0xff]
        %v308 = vld [vmem:[%s1 + $0x28] sm:$0xff]
        %v309 = vld [vmem:[%s1 + $0x30] sm:$0xff]
        %v310 = vld [vmem:[%s1 + $0x38] sm:$0xff]
        %vm311 = vcmask 523264
        %v313 = vsel %vm311, %v275, 0
        %v316 = vsel %vm311, %v276, 0
        %v319 = vsel %vm311, %v277, 0
        %v322 = vsel %vm311, %v278, 0
        %v325 = vsel %vm311, %v279, 0
        %v328 = vsel %vm311, %v280, 0
        %v331 = vsel %vm311, %v281, 0
        %v334 = vsel %vm311, %v282, 0
        %v337 = vsel %vm311, %v283, 0
        %v340 = vsel %vm311, %v284, 0
        %v343 = vsel %vm311, %v285, 0
        %v346 = vsel %vm311, %v286, 0
        %v349 = vsel %vm311, %v287, 0
        %v352 = vsel %vm311, %v288, 0
        %v355 = vsel %vm311, %v289, 0
        %v358 = vsel %vm311, %v290, 0
        %v361 = vsel %vm311, %v291, 0
        %v364 = vsel %vm311, %v292, 0
        %v367 = vsel %vm311, %v293, 0
        %v370 = vsel %vm311, %v294, 0
        %v373 = vsel %vm311, %v295, 0
        %v376 = vsel %vm311, %v296, 0
        %v379 = vsel %vm311, %v297, 0
        %v382 = vsel %vm311, %v298, 0
        %v385 = vsel %vm311, %v299, 0
        %v388 = vsel %vm311, %v300, 0
        %v391 = vsel %vm311, %v301, 0
        %v394 = vsel %vm311, %v302, 0
        %396 = vmatpush.msra.mxu0 0.0
        %397 = vmatpush.msra.mxu0 0.0
        %398 = vmatpush.msra.mxu0 0.0
        %399 = vmatpush.msra.mxu0 0.0
        %400 = vmatpush.msra.mxu0 0.0
        %401 = vmatpush.msra.mxu0 0.0
        %402 = vmatpush.msra.mxu0 0.0
        %403 = vmatpush.msra.mxu0 0.0
        %404 = vmatpush.msra.mxu0 %v310
        %405 = vmatpush.msra.mxu0 %v309
        %406 = vmatpush.msra.mxu0 %v308
        %407 = vmatpush.msra.mxu0 %v307
        %408 = vmatpush.msra.mxu0 %v306
        %409 = vmatpush.msra.mxu0 %v305
        %410 = vmatpush.msra.mxu0 %v304
        %411 = vmatpush.msra.mxu0 %v303
        %412 = vmatmul.f32.gmra.mxu0 %v313
        %v413 = vpop.f32.mrf.mxu0
        %v414 = vadd.f32 0.0, %v413
        %415 = vmatmul.f32.gmra.mxu0 %v316
        %v416 = vpop.f32.mrf.mxu0
        %v417 = vadd.f32 0.0, %v416
        %418 = vmatmul.f32.gmra.mxu0 %v319
        %v419 = vpop.f32.mrf.mxu0
        %v420 = vadd.f32 0.0, %v419
        %421 = vmatmul.f32.gmra.mxu0 %v322
        %v422 = vpop.f32.mrf.mxu0
        %v423 = vadd.f32 0.0, %v422
        %424 = vmatmul.f32.gmra.mxu0 %v325
        %v425 = vpop.f32.mrf.mxu0
        %v426 = vadd.f32 0.0, %v425
        %427 = vmatmul.f32.gmra.mxu0 %v328
        %v428 = vpop.f32.mrf.mxu0
        %v429 = vadd.f32 0.0, %v428
        %430 = vmatmul.f32.gmra.mxu0 %v331
        %v431 = vpop.f32.mrf.mxu0
        %v432 = vadd.f32 0.0, %v431
        %433 = vmatmul.f32.gmra.mxu0 %v334
        %v434 = vpop.f32.mrf.mxu0
        %v435 = vadd.f32 0.0, %v434
        %436 = vmatmul.f32.gmra.mxu0 %v337
        %v437 = vpop.f32.mrf.mxu0
        %v438 = vadd.f32 0.0, %v437
        %439 = vmatmul.f32.gmra.mxu0 %v340
        %v440 = vpop.f32.mrf.mxu0
        %v441 = vadd.f32 0.0, %v440
        %442 = vmatmul.f32.gmra.mxu0 %v343
        %v443 = vpop.f32.mrf.mxu0
        %v444 = vadd.f32 0.0, %v443
        %445 = vmatmul.f32.gmra.mxu0 %v346
        %v446 = vpop.f32.mrf.mxu0
        %v447 = vadd.f32 0.0, %v446
        %448 = vmatmul.f32.gmra.mxu0 %v349
        %v449 = vpop.f32.mrf.mxu0
        %v450 = vadd.f32 0.0, %v449
        %451 = vmatmul.f32.gmra.mxu0 %v352
        %v452 = vpop.f32.mrf.mxu0
        %v453 = vadd.f32 0.0, %v452
        %454 = vmatmul.f32.gmra.mxu0 %v355
        %v455 = vpop.f32.mrf.mxu0
        %v456 = vadd.f32 0.0, %v455
        %457 = vmatmul.f32.gmra.mxu0 %v358
        %v458 = vpop.f32.mrf.mxu0
        %v459 = vadd.f32 0.0, %v458
        %460 = vmatmul.f32.gmra.mxu0 %v361
        %v461 = vpop.f32.mrf.mxu0
        %v462 = vadd.f32 0.0, %v461
        %463 = vmatmul.f32.gmra.mxu0 %v364
        %v464 = vpop.f32.mrf.mxu0
        %v465 = vadd.f32 0.0, %v464
        %466 = vmatmul.f32.gmra.mxu0 %v367
        %v467 = vpop.f32.mrf.mxu0
        %v468 = vadd.f32 0.0, %v467
        %469 = vmatmul.f32.gmra.mxu0 %v370
        %v470 = vpop.f32.mrf.mxu0
        %v471 = vadd.f32 0.0, %v470
        %472 = vmatmul.f32.gmra.mxu0 %v373
        %v473 = vpop.f32.mrf.mxu0
        %v474 = vadd.f32 0.0, %v473
        %475 = vmatmul.f32.gmra.mxu0 %v376
        %v476 = vpop.f32.mrf.mxu0
        %v477 = vadd.f32 0.0, %v476
        %478 = vmatmul.f32.gmra.mxu0 %v379
        %v479 = vpop.f32.mrf.mxu0
        %v480 = vadd.f32 0.0, %v479
        %481 = vmatmul.f32.gmra.mxu0 %v382
        %v482 = vpop.f32.mrf.mxu0
        %v483 = vadd.f32 0.0, %v482
        %484 = vmatmul.f32.gmra.mxu0 %v385
        %v485 = vpop.f32.mrf.mxu0
        %v486 = vadd.f32 0.0, %v485
        %487 = vmatmul.f32.gmra.mxu0 %v388
        %v488 = vpop.f32.mrf.mxu0
        %v489 = vadd.f32 0.0, %v488
        %490 = vmatmul.f32.gmra.mxu0 %v391
        %v491 = vpop.f32.mrf.mxu0
        %v492 = vadd.f32 0.0, %v491
        %493 = vmatmul.f32.gmra.mxu0 %v394
        %v494 = vpop.f32.mrf.mxu0
        %v495 = vadd.f32 0.0, %v494
        %496 = vdwg.mxu0
        %v497 = vld [vmem:[%s2] sm:$0xff]
        %v498 = vld [vmem:[%s2 + $0x8] sm:$0xff]
        %v499 = vld [vmem:[%s2 + $0x10] sm:$0xff]
        %v500 = vld [vmem:[%s2 + $0x18] sm:$0xff]
        %v501 = vld [vmem:[%s2 + $0x20] sm:$0xff]
        %v502 = vld [vmem:[%s2 + $0x28] sm:$0xff]
        %v503 = vld [vmem:[%s2 + $0x30] sm:$0xff]
        %v504 = vld [vmem:[%s2 + $0x38] sm:$0xff]
        %505 = vmatpush.msra.mxu0 0.0
        %506 = vmatpush.msra.mxu0 0.0
        %507 = vmatpush.msra.mxu0 0.0
        %508 = vmatpush.msra.mxu0 0.0
        %509 = vmatpush.msra.mxu0 0.0
        %510 = vmatpush.msra.mxu0 0.0
        %511 = vmatpush.msra.mxu0 0.0
        %512 = vmatpush.msra.mxu0 0.0
        %513 = vmatpush.msra.mxu0 %v504
        %514 = vmatpush.msra.mxu0 %v503
        %515 = vmatpush.msra.mxu0 %v502
        %516 = vmatpush.msra.mxu0 %v501
        %517 = vmatpush.msra.mxu0 %v500
        %518 = vmatpush.msra.mxu0 %v499
        %519 = vmatpush.msra.mxu0 %v498
        %520 = vmatpush.msra.mxu0 %v497
        %521 = vmatmul.f32.gmra.mxu0 %v313
        %v522 = vpop.f32.mrf.mxu0
        %v523 = vadd.f32 0.0, %v522
        %524 = vmatmul.f32.gmra.mxu0 %v316
        %v525 = vpop.f32.mrf.mxu0
        %v526 = vadd.f32 0.0, %v525
        %527 = vmatmul.f32.gmra.mxu0 %v319
        %v528 = vpop.f32.mrf.mxu0
        %v529 = vadd.f32 0.0, %v528
        %530 = vmatmul.f32.gmra.mxu0 %v322
        %v531 = vpop.f32.mrf.mxu0
        %v532 = vadd.f32 0.0, %v531
        %533 = vmatmul.f32.gmra.mxu0 %v325
        %v534 = vpop.f32.mrf.mxu0
        %v535 = vadd.f32 0.0, %v534
        %536 = vmatmul.f32.gmra.mxu0 %v328
        %v537 = vpop.f32.mrf.mxu0
        %v538 = vadd.f32 0.0, %v537
        %539 = vmatmul.f32.gmra.mxu0 %v331
        %v540 = vpop.f32.mrf.mxu0
        %v541 = vadd.f32 0.0, %v540
        %542 = vmatmul.f32.gmra.mxu0 %v334
        %v543 = vpop.f32.mrf.mxu0
        %v544 = vadd.f32 0.0, %v543
        %545 = vmatmul.f32.gmra.mxu0 %v337
        %v546 = vpop.f32.mrf.mxu0
        %v547 = vadd.f32 0.0, %v546
        %548 = vmatmul.f32.gmra.mxu0 %v340
        %v549 = vpop.f32.mrf.mxu0
        %v550 = vadd.f32 0.0, %v549
        %551 = vmatmul.f32.gmra.mxu0 %v343
        %v552 = vpop.f32.mrf.mxu0
        %v553 = vadd.f32 0.0, %v552
        %554 = vmatmul.f32.gmra.mxu0 %v346
        %v555 = vpop.f32.mrf.mxu0
        %v556 = vadd.f32 0.0, %v555
        %557 = vmatmul.f32.gmra.mxu0 %v349
        %v558 = vpop.f32.mrf.mxu0
        %v559 = vadd.f32 0.0, %v558
        %560 = vmatmul.f32.gmra.mxu0 %v352
        %v561 = vpop.f32.mrf.mxu0
        %v562 = vadd.f32 0.0, %v561
        %563 = vmatmul.f32.gmra.mxu0 %v355
        %v564 = vpop.f32.mrf.mxu0
        %v565 = vadd.f32 0.0, %v564
        %566 = vmatmul.f32.gmra.mxu0 %v358
        %v567 = vpop.f32.mrf.mxu0
        %v568 = vadd.f32 0.0, %v567
        %569 = vmatmul.f32.gmra.mxu0 %v361
        %v570 = vpop.f32.mrf.mxu0
        %v571 = vadd.f32 0.0, %v570
        %572 = vmatmul.f32.gmra.mxu0 %v364
        %v573 = vpop.f32.mrf.mxu0
        %v574 = vadd.f32 0.0, %v573
        %575 = vmatmul.f32.gmra.mxu0 %v367
        %v576 = vpop.f32.mrf.mxu0
        %v577 = vadd.f32 0.0, %v576
        %578 = vmatmul.f32.gmra.mxu0 %v370
        %v579 = vpop.f32.mrf.mxu0
        %v580 = vadd.f32 0.0, %v579
        %581 = vmatmul.f32.gmra.mxu0 %v373
        %v582 = vpop.f32.mrf.mxu0
        %v583 = vadd.f32 0.0, %v582
        %584 = vmatmul.f32.gmra.mxu0 %v376
        %v585 = vpop.f32.mrf.mxu0
        %v586 = vadd.f32 0.0, %v585
        %587 = vmatmul.f32.gmra.mxu0 %v379
        %v588 = vpop.f32.mrf.mxu0
        %v589 = vadd.f32 0.0, %v588
        %590 = vmatmul.f32.gmra.mxu0 %v382
        %v591 = vpop.f32.mrf.mxu0
        %v592 = vadd.f32 0.0, %v591
        %593 = vmatmul.f32.gmra.mxu0 %v385
        %v594 = vpop.f32.mrf.mxu0
        %v595 = vadd.f32 0.0, %v594
        %596 = vmatmul.f32.gmra.mxu0 %v388
        %v597 = vpop.f32.mrf.mxu0
        %v598 = vadd.f32 0.0, %v597
        %599 = vmatmul.f32.gmra.mxu0 %v391
        %v600 = vpop.f32.mrf.mxu0
        %v601 = vadd.f32 0.0, %v600
        %602 = vmatmul.f32.gmra.mxu0 %v394
        %v603 = vpop.f32.mrf.mxu0
        %v604 = vadd.f32 0.0, %v603
        %605 = vdwg.mxu0
        %v606 = vld [vmem:[%s3] sm:$0xff]
        %v607 = vld [vmem:[%s3 + $0x8] sm:$0xff]
        %v608 = vld [vmem:[%s3 + $0x10] sm:$0xff]
        %v609 = vld [vmem:[%s3 + $0x18] sm:$0xff]
        %v610 = vld [vmem:[%s3 + $0x20] sm:$0xff]
        %v611 = vld [vmem:[%s3 + $0x28] sm:$0xff]
        %v612 = vld [vmem:[%s3 + $0x30] sm:$0xff]
        %v613 = vld [vmem:[%s3 + $0x38] sm:$0xff]
        %614 = vmatpush.msra.mxu0 0.0
        %615 = vmatpush.msra.mxu0 0.0
        %616 = vmatpush.msra.mxu0 0.0
        %617 = vmatpush.msra.mxu0 0.0
        %618 = vmatpush.msra.mxu0 0.0
        %619 = vmatpush.msra.mxu0 0.0
        %620 = vmatpush.msra.mxu0 0.0
        %621 = vmatpush.msra.mxu0 0.0
        %622 = vmatpush.msra.mxu0 %v613
        %623 = vmatpush.msra.mxu0 %v612
        %624 = vmatpush.msra.mxu0 %v611
        %625 = vmatpush.msra.mxu0 %v610
        %626 = vmatpush.msra.mxu0 %v609
        %627 = vmatpush.msra.mxu0 %v608
        %628 = vmatpush.msra.mxu0 %v607
        %629 = vmatpush.msra.mxu0 %v606
        %630 = vmatmul.f32.gmra.mxu0 %v313
        %v631 = vpop.f32.mrf.mxu0
        %v632 = vadd.f32 0.0, %v631
        %633 = vmatmul.f32.gmra.mxu0 %v316
        %v634 = vpop.f32.mrf.mxu0
        %v635 = vadd.f32 0.0, %v634
        %636 = vmatmul.f32.gmra.mxu0 %v319
        %v637 = vpop.f32.mrf.mxu0
        %v638 = vadd.f32 0.0, %v637
        %639 = vmatmul.f32.gmra.mxu0 %v322
        %v640 = vpop.f32.mrf.mxu0
        %v641 = vadd.f32 0.0, %v640
        %642 = vmatmul.f32.gmra.mxu0 %v325
        %v643 = vpop.f32.mrf.mxu0
        %v644 = vadd.f32 0.0, %v643
        %645 = vmatmul.f32.gmra.mxu0 %v328
        %v646 = vpop.f32.mrf.mxu0
        %v647 = vadd.f32 0.0, %v646
        %648 = vmatmul.f32.gmra.mxu0 %v331
        %v649 = vpop.f32.mrf.mxu0
        %v650 = vadd.f32 0.0, %v649
        %651 = vmatmul.f32.gmra.mxu0 %v334
        %v652 = vpop.f32.mrf.mxu0
        %v653 = vadd.f32 0.0, %v652
        %654 = vmatmul.f32.gmra.mxu0 %v337
        %v655 = vpop.f32.mrf.mxu0
        %v656 = vadd.f32 0.0, %v655
        %657 = vmatmul.f32.gmra.mxu0 %v340
        %v658 = vpop.f32.mrf.mxu0
        %v659 = vadd.f32 0.0, %v658
        %660 = vmatmul.f32.gmra.mxu0 %v343
        %v661 = vpop.f32.mrf.mxu0
        %v662 = vadd.f32 0.0, %v661
        %663 = vmatmul.f32.gmra.mxu0 %v346
        %v664 = vpop.f32.mrf.mxu0
        %v665 = vadd.f32 0.0, %v664
        %666 = vmatmul.f32.gmra.mxu0 %v349
        %v667 = vpop.f32.mrf.mxu0
        %v668 = vadd.f32 0.0, %v667
        %669 = vmatmul.f32.gmra.mxu0 %v352
        %v670 = vpop.f32.mrf.mxu0
        %v671 = vadd.f32 0.0, %v670
        %672 = vmatmul.f32.gmra.mxu0 %v355
        %v673 = vpop.f32.mrf.mxu0
        %v674 = vadd.f32 0.0, %v673
        %675 = vmatmul.f32.gmra.mxu0 %v358
        %v676 = vpop.f32.mrf.mxu0
        %v677 = vadd.f32 0.0, %v676
        %678 = vmatmul.f32.gmra.mxu0 %v361
        %v679 = vpop.f32.mrf.mxu0
        %v680 = vadd.f32 0.0, %v679
        %681 = vmatmul.f32.gmra.mxu0 %v364
        %v682 = vpop.f32.mrf.mxu0
        %v683 = vadd.f32 0.0, %v682
        %684 = vmatmul.f32.gmra.mxu0 %v367
        %v685 = vpop.f32.mrf.mxu0
        %v686 = vadd.f32 0.0, %v685
        %687 = vmatmul.f32.gmra.mxu0 %v370
        %v688 = vpop.f32.mrf.mxu0
        %v689 = vadd.f32 0.0, %v688
        %690 = vmatmul.f32.gmra.mxu0 %v373
        %v691 = vpop.f32.mrf.mxu0
        %v692 = vadd.f32 0.0, %v691
        %693 = vmatmul.f32.gmra.mxu0 %v376
        %v694 = vpop.f32.mrf.mxu0
        %v695 = vadd.f32 0.0, %v694
        %696 = vmatmul.f32.gmra.mxu0 %v379
        %v697 = vpop.f32.mrf.mxu0
        %v698 = vadd.f32 0.0, %v697
        %699 = vmatmul.f32.gmra.mxu0 %v382
        %v700 = vpop.f32.mrf.mxu0
        %v701 = vadd.f32 0.0, %v700
        %702 = vmatmul.f32.gmra.mxu0 %v385
        %v703 = vpop.f32.mrf.mxu0
        %v704 = vadd.f32 0.0, %v703
        %705 = vmatmul.f32.gmra.mxu0 %v388
        %v706 = vpop.f32.mrf.mxu0
        %v707 = vadd.f32 0.0, %v706
        %708 = vmatmul.f32.gmra.mxu0 %v391
        %v709 = vpop.f32.mrf.mxu0
        %v710 = vadd.f32 0.0, %v709
        %711 = vmatmul.f32.gmra.mxu0 %v394
        %v712 = vpop.f32.mrf.mxu0
        %v713 = vadd.f32 0.0, %v712
        %714 = vdwg.mxu0
        %v715 = vld [vmem:[%s5] sm:$0xff]
        %v716 = vld [vmem:[%s5 + $0x8] sm:$0xff]
        %v717 = vld [vmem:[%s5 + $0x10] sm:$0xff]
        %v718 = vld [vmem:[%s5 + $0x18] sm:$0xff]
        %v719 = vld [vmem:[%s5 + $0x20] sm:$0xff]
        %v720 = vld [vmem:[%s5 + $0x28] sm:$0xff]
        %v721 = vld [vmem:[%s5 + $0x30] sm:$0xff]
        %vm722 = vcmask 261120
        %v724 = vsel %vm722, %v414, 0
        %v727 = vsel %vm722, %v417, 0
        %v730 = vsel %vm722, %v420, 0
        %v733 = vsel %vm722, %v423, 0
        %v736 = vsel %vm722, %v426, 0
        %v739 = vsel %vm722, %v429, 0
        %v742 = vsel %vm722, %v432, 0
        %v745 = vsel %vm722, %v523, 0
        %v748 = vsel %vm722, %v526, 0
        %v751 = vsel %vm722, %v529, 0
        %v754 = vsel %vm722, %v532, 0
        %v757 = vsel %vm722, %v535, 0
        %v760 = vsel %vm722, %v538, 0
        %v763 = vsel %vm722, %v541, 0
        %765 = vmatpush.xpose.msra.mxu0 0.0
        %766 = vmatpush.xpose.msra.mxu0 0.0
        %767 = vmatpush.xpose.msra.mxu0 0.0
        %768 = vmatpush.xpose.msra.mxu0 0.0
        %769 = vmatpush.xpose.msra.mxu0 0.0
        %770 = vmatpush.xpose.msra.mxu0 0.0
        %771 = vmatpush.xpose.msra.mxu0 0.0
        %772 = vmatpush.xpose.msra.mxu0 0.0
        %773 = vmatpush.xpose.msra.mxu0 0.0
        %774 = vmatpush.xpose.msra.mxu0 %v763
        %775 = vmatpush.xpose.msra.mxu0 %v760
        %776 = vmatpush.xpose.msra.mxu0 %v757
        %777 = vmatpush.xpose.msra.mxu0 %v754
        %778 = vmatpush.xpose.msra.mxu0 %v751
        %779 = vmatpush.xpose.msra.mxu0 %v748
        %780 = vmatpush.xpose.msra.mxu0 %v745
        %781 = vmatmul.f32.gmra.mxu0 %v724
        %v782 = vpop.f32.mrf.mxu0
        %v783 = vadd.f32 %v715, %v782
        %784 = vmatmul.f32.gmra.mxu0 %v727
        %v785 = vpop.f32.mrf.mxu0
        %v786 = vadd.f32 %v716, %v785
        %787 = vmatmul.f32.gmra.mxu0 %v730
        %v788 = vpop.f32.mrf.mxu0
        %v789 = vadd.f32 %v717, %v788
        %790 = vmatmul.f32.gmra.mxu0 %v733
        %v791 = vpop.f32.mrf.mxu0
        %v792 = vadd.f32 %v718, %v791
        %793 = vmatmul.f32.gmra.mxu0 %v736
        %v794 = vpop.f32.mrf.mxu0
        %v795 = vadd.f32 %v719, %v794
        %796 = vmatmul.f32.gmra.mxu0 %v739
        %v797 = vpop.f32.mrf.mxu0
        %v798 = vadd.f32 %v720, %v797
        %799 = vmatmul.f32.gmra.mxu0 %v742
        %v800 = vpop.f32.mrf.mxu0
        %v801 = vadd.f32 %v721, %v800
        %802 = vdwg.mxu0
        %v804 = vsel %vm722, %v435, 0
        %v807 = vsel %vm722, %v438, 0
        %v810 = vsel %vm722, %v441, 0
        %v813 = vsel %vm722, %v444, 0
        %v816 = vsel %vm722, %v447, 0
        %v819 = vsel %vm722, %v450, 0
        %v822 = vsel %vm722, %v453, 0
        %v825 = vsel %vm722, %v544, 0
        %v828 = vsel %vm722, %v547, 0
        %v831 = vsel %vm722, %v550, 0
        %v834 = vsel %vm722, %v553, 0
        %v837 = vsel %vm722, %v556, 0
        %v840 = vsel %vm722, %v559, 0
        %v843 = vsel %vm722, %v562, 0
        %845 = vmatpush.xpose.msra.mxu0 0.0
        %846 = vmatpush.xpose.msra.mxu0 0.0
        %847 = vmatpush.xpose.msra.mxu0 0.0
        %848 = vmatpush.xpose.msra.mxu0 0.0
        %849 = vmatpush.xpose.msra.mxu0 0.0
        %850 = vmatpush.xpose.msra.mxu0 0.0
        %851 = vmatpush.xpose.msra.mxu0 0.0
        %852 = vmatpush.xpose.msra.mxu0 0.0
        %853 = vmatpush.xpose.msra.mxu0 0.0
        %854 = vmatpush.xpose.msra.mxu0 %v843
        %855 = vmatpush.xpose.msra.mxu0 %v840
        %856 = vmatpush.xpose.msra.mxu0 %v837
        %857 = vmatpush.xpose.msra.mxu0 %v834
        %858 = vmatpush.xpose.msra.mxu0 %v831
        %859 = vmatpush.xpose.msra.mxu0 %v828
        %860 = vmatpush.xpose.msra.mxu0 %v825
        %861 = vmatmul.f32.gmra.mxu0 %v804
        %v862 = vpop.f32.mrf.mxu0
        %v863 = vadd.f32 %v715, %v862
        %864 = vmatmul.f32.gmra.mxu0 %v807
        %v865 = vpop.f32.mrf.mxu0
        %v866 = vadd.f32 %v716, %v865
        %867 = vmatmul.f32.gmra.mxu0 %v810
        %v868 = vpop.f32.mrf.mxu0
        %v869 = vadd.f32 %v717, %v868
        %870 = vmatmul.f32.gmra.mxu0 %v813
        %v871 = vpop.f32.mrf.mxu0
        %v872 = vadd.f32 %v718, %v871
        %873 = vmatmul.f32.gmra.mxu0 %v816
        %v874 = vpop.f32.mrf.mxu0
        %v875 = vadd.f32 %v719, %v874
        %876 = vmatmul.f32.gmra.mxu0 %v819
        %v877 = vpop.f32.mrf.mxu0
        %v878 = vadd.f32 %v720, %v877
        %879 = vmatmul.f32.gmra.mxu0 %v822
        %v880 = vpop.f32.mrf.mxu0
        %v881 = vadd.f32 %v721, %v880
        %882 = vdwg.mxu0
        %v884 = vsel %vm722, %v456, 0
        %v887 = vsel %vm722, %v459, 0
        %v890 = vsel %vm722, %v462, 0
        %v893 = vsel %vm722, %v465, 0
        %v896 = vsel %vm722, %v468, 0
        %v899 = vsel %vm722, %v471, 0
        %v902 = vsel %vm722, %v474, 0
        %v905 = vsel %vm722, %v565, 0
        %v908 = vsel %vm722, %v568, 0
        %v911 = vsel %vm722, %v571, 0
        %v914 = vsel %vm722, %v574, 0
        %v917 = vsel %vm722, %v577, 0
        %v920 = vsel %vm722, %v580, 0
        %v923 = vsel %vm722, %v583, 0
        %925 = vmatpush.xpose.msra.mxu0 0.0
        %926 = vmatpush.xpose.msra.mxu0 0.0
        %927 = vmatpush.xpose.msra.mxu0 0.0
        %928 = vmatpush.xpose.msra.mxu0 0.0
        %929 = vmatpush.xpose.msra.mxu0 0.0
        %930 = vmatpush.xpose.msra.mxu0 0.0
        %931 = vmatpush.xpose.msra.mxu0 0.0
        %932 = vmatpush.xpose.msra.mxu0 0.0
        %933 = vmatpush.xpose.msra.mxu0 0.0
        %934 = vmatpush.xpose.msra.mxu0 %v923
        %935 = vmatpush.xpose.msra.mxu0 %v920
        %936 = vmatpush.xpose.msra.mxu0 %v917
        %937 = vmatpush.xpose.msra.mxu0 %v914
        %938 = vmatpush.xpose.msra.mxu0 %v911
        %939 = vmatpush.xpose.msra.mxu0 %v908
        %940 = vmatpush.xpose.msra.mxu0 %v905
        %941 = vmatmul.f32.gmra.mxu0 %v884
        %v942 = vpop.f32.mrf.mxu0
        %v943 = vadd.f32 %v715, %v942
        %944 = vmatmul.f32.gmra.mxu0 %v887
        %v945 = vpop.f32.mrf.mxu0
        %v946 = vadd.f32 %v716, %v945
        %947 = vmatmul.f32.gmra.mxu0 %v890
        %v948 = vpop.f32.mrf.mxu0
        %v949 = vadd.f32 %v717, %v948
        %950 = vmatmul.f32.gmra.mxu0 %v893
        %v951 = vpop.f32.mrf.mxu0
        %v952 = vadd.f32 %v718, %v951
        %953 = vmatmul.f32.gmra.mxu0 %v896
        %v954 = vpop.f32.mrf.mxu0
        %v955 = vadd.f32 %v719, %v954
        %956 = vmatmul.f32.gmra.mxu0 %v899
        %v957 = vpop.f32.mrf.mxu0
        %v958 = vadd.f32 %v720, %v957
        %959 = vmatmul.f32.gmra.mxu0 %v902
        %v960 = vpop.f32.mrf.mxu0
        %v961 = vadd.f32 %v721, %v960
        %962 = vdwg.mxu0
        %v964 = vsel %vm722, %v477, 0
        %v967 = vsel %vm722, %v480, 0
        %v970 = vsel %vm722, %v483, 0
        %v973 = vsel %vm722, %v486, 0
        %v976 = vsel %vm722, %v489, 0
        %v979 = vsel %vm722, %v492, 0
        %v982 = vsel %vm722, %v495, 0
        %v985 = vsel %vm722, %v586, 0
        %v988 = vsel %vm722, %v589, 0
        %v991 = vsel %vm722, %v592, 0
        %v994 = vsel %vm722, %v595, 0
        %v997 = vsel %vm722, %v598, 0
        %v1000 = vsel %vm722, %v601, 0
        %v1003 = vsel %vm722, %v604, 0
        %1005 = vmatpush.xpose.msra.mxu0 0.0
        %1006 = vmatpush.xpose.msra.mxu0 0.0
        %1007 = vmatpush.xpose.msra.mxu0 0.0
        %1008 = vmatpush.xpose.msra.mxu0 0.0
        %1009 = vmatpush.xpose.msra.mxu0 0.0
        %1010 = vmatpush.xpose.msra.mxu0 0.0
        %1011 = vmatpush.xpose.msra.mxu0 0.0
        %1012 = vmatpush.xpose.msra.mxu0 0.0
        %1013 = vmatpush.xpose.msra.mxu0 0.0
        %1014 = vmatpush.xpose.msra.mxu0 %v1003
        %1015 = vmatpush.xpose.msra.mxu0 %v1000
        %1016 = vmatpush.xpose.msra.mxu0 %v997
        %1017 = vmatpush.xpose.msra.mxu0 %v994
        %1018 = vmatpush.xpose.msra.mxu0 %v991
        %1019 = vmatpush.xpose.msra.mxu0 %v988
        %1020 = vmatpush.xpose.msra.mxu0 %v985
        %1021 = vmatmul.f32.gmra.mxu0 %v964
        %v1022 = vpop.f32.mrf.mxu0
        %v1023 = vadd.f32 %v715, %v1022
        %1024 = vmatmul.f32.gmra.mxu0 %v967
        %v1025 = vpop.f32.mrf.mxu0
        %v1026 = vadd.f32 %v716, %v1025
        %1027 = vmatmul.f32.gmra.mxu0 %v970
        %v1028 = vpop.f32.mrf.mxu0
        %v1029 = vadd.f32 %v717, %v1028
        %1030 = vmatmul.f32.gmra.mxu0 %v973
        %v1031 = vpop.f32.mrf.mxu0
        %v1032 = vadd.f32 %v718, %v1031
        %1033 = vmatmul.f32.gmra.mxu0 %v976
        %v1034 = vpop.f32.mrf.mxu0
        %v1035 = vadd.f32 %v719, %v1034
        %1036 = vmatmul.f32.gmra.mxu0 %v979
        %v1037 = vpop.f32.mrf.mxu0
        %v1038 = vadd.f32 %v720, %v1037
        %1039 = vmatmul.f32.gmra.mxu0 %v982
        %v1040 = vpop.f32.mrf.mxu0
        %v1041 = vadd.f32 %v721, %v1040
        %1042 = vdwg.mxu0
        %vm1043 = vcmask 457728
        %v1044 = vsel %vm1043, %v783, -inf
        %1045 = vmax.xlane.f32.xlu0 %v1044
        %v1046 = vpop.xlane.xlu0 %1045
        %v1047 = vsel %vm1043, %v786, -inf
        %1048 = vmax.xlane.f32.xlu0 %v1047
        %v1049 = vpop.xlane.xlu0 %1048
        %v1050 = vsel %vm1043, %v789, -inf
        %1051 = vmax.xlane.f32.xlu0 %v1050
        %v1052 = vpop.xlane.xlu0 %1051
        %v1053 = vsel %vm1043, %v792, -inf
        %1054 = vmax.xlane.f32.xlu0 %v1053
        %v1055 = vpop.xlane.xlu0 %1054
        %v1056 = vsel %vm1043, %v795, -inf
        %1057 = vmax.xlane.f32.xlu0 %v1056
        %v1058 = vpop.xlane.xlu0 %1057
        %v1059 = vsel %vm1043, %v798, -inf
        %1060 = vmax.xlane.f32.xlu0 %v1059
        %v1061 = vpop.xlane.xlu0 %1060
        %v1062 = vsel %vm1043, %v801, -inf
        %1063 = vmax.xlane.f32.xlu0 %v1062
        %v1064 = vpop.xlane.xlu0 %1063
        %v1065 = vsel %vm1043, %v863, -inf
        %1066 = vmax.xlane.f32.xlu0 %v1065
        %v1067 = vpop.xlane.xlu0 %1066
        %v1068 = vsel %vm1043, %v866, -inf
        %1069 = vmax.xlane.f32.xlu0 %v1068
        %v1070 = vpop.xlane.xlu0 %1069
        %v1071 = vsel %vm1043, %v869, -inf
        %1072 = vmax.xlane.f32.xlu0 %v1071
        %v1073 = vpop.xlane.xlu0 %1072
        %v1074 = vsel %vm1043, %v872, -inf
        %1075 = vmax.xlane.f32.xlu0 %v1074
        %v1076 = vpop.xlane.xlu0 %1075
        %v1077 = vsel %vm1043, %v875, -inf
        %1078 = vmax.xlane.f32.xlu0 %v1077
        %v1079 = vpop.xlane.xlu0 %1078
        %v1080 = vsel %vm1043, %v878, -inf
        %1081 = vmax.xlane.f32.xlu0 %v1080
        %v1082 = vpop.xlane.xlu0 %1081
        %v1083 = vsel %vm1043, %v881, -inf
        %1084 = vmax.xlane.f32.xlu0 %v1083
        %v1085 = vpop.xlane.xlu0 %1084
        %v1086 = vsel %vm1043, %v943, -inf
        %1087 = vmax.xlane.f32.xlu0 %v1086
        %v1088 = vpop.xlane.xlu0 %1087
        %v1089 = vsel %vm1043, %v946, -inf
        %1090 = vmax.xlane.f32.xlu0 %v1089
        %v1091 = vpop.xlane.xlu0 %1090
        %v1092 = vsel %vm1043, %v949, -inf
        %1093 = vmax.xlane.f32.xlu0 %v1092
        %v1094 = vpop.xlane.xlu0 %1093
        %v1095 = vsel %vm1043, %v952, -inf
        %1096 = vmax.xlane.f32.xlu0 %v1095
        %v1097 = vpop.xlane.xlu0 %1096
        %v1098 = vsel %vm1043, %v955, -inf
        %1099 = vmax.xlane.f32.xlu0 %v1098
        %v1100 = vpop.xlane.xlu0 %1099
        %v1101 = vsel %vm1043, %v958, -inf
        %1102 = vmax.xlane.f32.xlu0 %v1101
        %v1103 = vpop.xlane.xlu0 %1102
        %v1104 = vsel %vm1043, %v961, -inf
        %1105 = vmax.xlane.f32.xlu0 %v1104
        %v1106 = vpop.xlane.xlu0 %1105
        %v1107 = vsel %vm1043, %v1023, -inf
        %1108 = vmax.xlane.f32.xlu0 %v1107
        %v1109 = vpop.xlane.xlu0 %1108
        %v1110 = vsel %vm1043, %v1026, -inf
        %1111 = vmax.xlane.f32.xlu0 %v1110
        %v1112 = vpop.xlane.xlu0 %1111
        %v1113 = vsel %vm1043, %v1029, -inf
        %1114 = vmax.xlane.f32.xlu0 %v1113
        %v1115 = vpop.xlane.xlu0 %1114
        %v1116 = vsel %vm1043, %v1032, -inf
        %1117 = vmax.xlane.f32.xlu0 %v1116
        %v1118 = vpop.xlane.xlu0 %1117
        %v1119 = vsel %vm1043, %v1035, -inf
        %1120 = vmax.xlane.f32.xlu0 %v1119
        %v1121 = vpop.xlane.xlu0 %1120
        %v1122 = vsel %vm1043, %v1038, -inf
        %1123 = vmax.xlane.f32.xlu0 %v1122
        %v1124 = vpop.xlane.xlu0 %1123
        %v1125 = vsel %vm1043, %v1041, -inf
        %1126 = vmax.xlane.f32.xlu0 %v1125
        %v1127 = vpop.xlane.xlu0 %1126
        %v1128 = vsub.f32 %v783, %v1046
        %v1129 = vsub.f32 %v786, %v1049
        %v1130 = vsub.f32 %v789, %v1052
        %v1131 = vsub.f32 %v792, %v1055
        %v1132 = vsub.f32 %v795, %v1058
        %v1133 = vsub.f32 %v798, %v1061
        %v1134 = vsub.f32 %v801, %v1064
        %v1135 = vsub.f32 %v863, %v1067
        %v1136 = vsub.f32 %v866, %v1070
        %v1137 = vsub.f32 %v869, %v1073
        %v1138 = vsub.f32 %v872, %v1076
        %v1139 = vsub.f32 %v875, %v1079
        %v1140 = vsub.f32 %v878, %v1082
        %v1141 = vsub.f32 %v881, %v1085
        %v1142 = vsub.f32 %v943, %v1088
        %v1143 = vsub.f32 %v946, %v1091
        %v1144 = vsub.f32 %v949, %v1094
        %v1145 = vsub.f32 %v952, %v1097
        %v1146 = vsub.f32 %v955, %v1100
        %v1147 = vsub.f32 %v958, %v1103
        %v1148 = vsub.f32 %v961, %v1106
        %v1149 = vsub.f32 %v1023, %v1109
        %v1150 = vsub.f32 %v1026, %v1112
        %v1151 = vsub.f32 %v1029, %v1115
        %v1152 = vsub.f32 %v1032, %v1118
        %v1153 = vsub.f32 %v1035, %v1121
        %v1154 = vsub.f32 %v1038, %v1124
        %v1155 = vsub.f32 %v1041, %v1127
        %v1156 = vmul.f32 %v1128, 1.442695
        %v1157 = vpow.pop %v1156
        %v1158 = vmul.f32 %v1129, 1.442695
        %v1159 = vpow.pop %v1158
        %v1160 = vmul.f32 %v1130, 1.442695
        %v1161 = vpow.pop %v1160
        %v1162 = vmul.f32 %v1131, 1.442695
        %v1163 = vpow.pop %v1162
        %v1164 = vmul.f32 %v1132, 1.442695
        %v1165 = vpow.pop %v1164
        %v1166 = vmul.f32 %v1133, 1.442695
        %v1167 = vpow.pop %v1166
        %v1168 = vmul.f32 %v1134, 1.442695
        %v1169 = vpow.pop %v1168
        %v1170 = vmul.f32 %v1135, 1.442695
        %v1171 = vpow.pop %v1170
        %v1172 = vmul.f32 %v1136, 1.442695
        %v1173 = vpow.pop %v1172
        %v1174 = vmul.f32 %v1137, 1.442695
        %v1175 = vpow.pop %v1174
        %v1176 = vmul.f32 %v1138, 1.442695
        %v1177 = vpow.pop %v1176
        %v1178 = vmul.f32 %v1139, 1.442695
        %v1179 = vpow.pop %v1178
        %v1180 = vmul.f32 %v1140, 1.442695
        %v1181 = vpow.pop %v1180
        %v1182 = vmul.f32 %v1141, 1.442695
        %v1183 = vpow.pop %v1182
        %v1184 = vmul.f32 %v1142, 1.442695
        %v1185 = vpow.pop %v1184
        %v1186 = vmul.f32 %v1143, 1.442695
        %v1187 = vpow.pop %v1186
        %v1188 = vmul.f32 %v1144, 1.442695
        %v1189 = vpow.pop %v1188
        %v1190 = vmul.f32 %v1145, 1.442695
        %v1191 = vpow.pop %v1190
        %v1192 = vmul.f32 %v1146, 1.442695
        %v1193 = vpow.pop %v1192
        %v1194 = vmul.f32 %v1147, 1.442695
        %v1195 = vpow.pop %v1194
        %v1196 = vmul.f32 %v1148, 1.442695
        %v1197 = vpow.pop %v1196
        %v1198 = vmul.f32 %v1149, 1.442695
        %v1199 = vpow.pop %v1198
        %v1200 = vmul.f32 %v1150, 1.442695
        %v1201 = vpow.pop %v1200
        %v1202 = vmul.f32 %v1151, 1.442695
        %v1203 = vpow.pop %v1202
        %v1204 = vmul.f32 %v1152, 1.442695
        %v1205 = vpow.pop %v1204
        %v1206 = vmul.f32 %v1153, 1.442695
        %v1207 = vpow.pop %v1206
        %v1208 = vmul.f32 %v1154, 1.442695
        %v1209 = vpow.pop %v1208
        %v1210 = vmul.f32 %v1155, 1.442695
        %v1211 = vpow.pop %v1210
        %v1212 = vsel %vm1043, %v1157, 0.0
        %1213 = vadd.xlane.f32.xlu0 %v1212
        %v1214 = vpop.xlane.xlu0 %1213
        %v1215 = vsel %vm1043, %v1159, 0.0
        %1216 = vadd.xlane.f32.xlu0 %v1215
        %v1217 = vpop.xlane.xlu0 %1216
        %v1218 = vsel %vm1043, %v1161, 0.0
        %1219 = vadd.xlane.f32.xlu0 %v1218
        %v1220 = vpop.xlane.xlu0 %1219
        %v1221 = vsel %vm1043, %v1163, 0.0
        %1222 = vadd.xlane.f32.xlu0 %v1221
        %v1223 = vpop.xlane.xlu0 %1222
        %v1224 = vsel %vm1043, %v1165, 0.0
        %1225 = vadd.xlane.f32.xlu0 %v1224
        %v1226 = vpop.xlane.xlu0 %1225
        %v1227 = vsel %vm1043, %v1167, 0.0
        %1228 = vadd.xlane.f32.xlu0 %v1227
        %v1229 = vpop.xlane.xlu0 %1228
        %v1230 = vsel %vm1043, %v1169, 0.0
        %1231 = vadd.xlane.f32.xlu0 %v1230
        %v1232 = vpop.xlane.xlu0 %1231
        %v1233 = vsel %vm1043, %v1171, 0.0
        %1234 = vadd.xlane.f32.xlu0 %v1233
        %v1235 = vpop.xlane.xlu0 %1234
        %v1236 = vsel %vm1043, %v1173, 0.0
        %1237 = vadd.xlane.f32.xlu0 %v1236
        %v1238 = vpop.xlane.xlu0 %1237
        %v1239 = vsel %vm1043, %v1175, 0.0
        %1240 = vadd.xlane.f32.xlu0 %v1239
        %v1241 = vpop.xlane.xlu0 %1240
        %v1242 = vsel %vm1043, %v1177, 0.0
        %1243 = vadd.xlane.f32.xlu0 %v1242
        %v1244 = vpop.xlane.xlu0 %1243
        %v1245 = vsel %vm1043, %v1179, 0.0
        %1246 = vadd.xlane.f32.xlu0 %v1245
        %v1247 = vpop.xlane.xlu0 %1246
        %v1248 = vsel %vm1043, %v1181, 0.0
        %1249 = vadd.xlane.f32.xlu0 %v1248
        %v1250 = vpop.xlane.xlu0 %1249
        %v1251 = vsel %vm1043, %v1183, 0.0
        %1252 = vadd.xlane.f32.xlu0 %v1251
        %v1253 = vpop.xlane.xlu0 %1252
        %v1254 = vsel %vm1043, %v1185, 0.0
        %1255 = vadd.xlane.f32.xlu0 %v1254
        %v1256 = vpop.xlane.xlu0 %1255
        %v1257 = vsel %vm1043, %v1187, 0.0
        %1258 = vadd.xlane.f32.xlu0 %v1257
        %v1259 = vpop.xlane.xlu0 %1258
        %v1260 = vsel %vm1043, %v1189, 0.0
        %1261 = vadd.xlane.f32.xlu0 %v1260
        %v1262 = vpop.xlane.xlu0 %1261
        %v1263 = vsel %vm1043, %v1191, 0.0
        %1264 = vadd.xlane.f32.xlu0 %v1263
        %v1265 = vpop.xlane.xlu0 %1264
        %v1266 = vsel %vm1043, %v1193, 0.0
        %1267 = vadd.xlane.f32.xlu0 %v1266
        %v1268 = vpop.xlane.xlu0 %1267
        %v1269 = vsel %vm1043, %v1195, 0.0
        %1270 = vadd.xlane.f32.xlu0 %v1269
        %v1271 = vpop.xlane.xlu0 %1270
        %v1272 = vsel %vm1043, %v1197, 0.0
        %1273 = vadd.xlane.f32.xlu0 %v1272
        %v1274 = vpop.xlane.xlu0 %1273
        %v1275 = vsel %vm1043, %v1199, 0.0
        %1276 = vadd.xlane.f32.xlu0 %v1275
        %v1277 = vpop.xlane.xlu0 %1276
        %v1278 = vsel %vm1043, %v1201, 0.0
        %1279 = vadd.xlane.f32.xlu0 %v1278
        %v1280 = vpop.xlane.xlu0 %1279
        %v1281 = vsel %vm1043, %v1203, 0.0
        %1282 = vadd.xlane.f32.xlu0 %v1281
        %v1283 = vpop.xlane.xlu0 %1282
        %v1284 = vsel %vm1043, %v1205, 0.0
        %1285 = vadd.xlane.f32.xlu0 %v1284
        %v1286 = vpop.xlane.xlu0 %1285
        %v1287 = vsel %vm1043, %v1207, 0.0
        %1288 = vadd.xlane.f32.xlu0 %v1287
        %v1289 = vpop.xlane.xlu0 %1288
        %v1290 = vsel %vm1043, %v1209, 0.0
        %1291 = vadd.xlane.f32.xlu0 %v1290
        %v1292 = vpop.xlane.xlu0 %1291
        %v1293 = vsel %vm1043, %v1211, 0.0
        %1294 = vadd.xlane.f32.xlu0 %v1293
        %v1295 = vpop.xlane.xlu0 %1294
        %v1297 = vsel %vm1043, %v1157, 0
        %v1300 = vsel %vm1043, %v1159, 0
        %v1303 = vsel %vm1043, %v1161, 0
        %v1306 = vsel %vm1043, %v1163, 0
        %v1309 = vsel %vm1043, %v1165, 0
        %v1312 = vsel %vm1043, %v1167, 0
        %v1315 = vsel %vm1043, %v1169, 0
        %1317 = vmatpush.msra.mxu0 0.0
        %1318 = vmatpush.msra.mxu0 0.0
        %1319 = vmatpush.msra.mxu0 0.0
        %1320 = vmatpush.msra.mxu0 0.0
        %1321 = vmatpush.msra.mxu0 0.0
        %1322 = vmatpush.msra.mxu0 0.0
        %1323 = vmatpush.msra.mxu0 0.0
        %1324 = vmatpush.msra.mxu0 0.0
        %1325 = vmatpush.msra.mxu0 0.0
        %1326 = vmatpush.msra.mxu0 %v650
        %1327 = vmatpush.msra.mxu0 %v647
        %1328 = vmatpush.msra.mxu0 %v644
        %1329 = vmatpush.msra.mxu0 %v641
        %1330 = vmatpush.msra.mxu0 %v638
        %1331 = vmatpush.msra.mxu0 %v635
        %1332 = vmatpush.msra.mxu0 %v632
        %1333 = vmatmul.f32.gmra.mxu0 %v1297
        %v1334 = vpop.f32.mrf.mxu0
        %v1335 = vadd.f32 0.0, %v1334
        %1336 = vmatmul.f32.gmra.mxu0 %v1300
        %v1337 = vpop.f32.mrf.mxu0
        %v1338 = vadd.f32 0.0, %v1337
        %1339 = vmatmul.f32.gmra.mxu0 %v1303
        %v1340 = vpop.f32.mrf.mxu0
        %v1341 = vadd.f32 0.0, %v1340
        %1342 = vmatmul.f32.gmra.mxu0 %v1306
        %v1343 = vpop.f32.mrf.mxu0
        %v1344 = vadd.f32 0.0, %v1343
        %1345 = vmatmul.f32.gmra.mxu0 %v1309
        %v1346 = vpop.f32.mrf.mxu0
        %v1347 = vadd.f32 0.0, %v1346
        %1348 = vmatmul.f32.gmra.mxu0 %v1312
        %v1349 = vpop.f32.mrf.mxu0
        %v1350 = vadd.f32 0.0, %v1349
        %1351 = vmatmul.f32.gmra.mxu0 %v1315
        %v1352 = vpop.f32.mrf.mxu0
        %v1353 = vadd.f32 0.0, %v1352
        %1354 = vdwg.mxu0
        %v1356 = vsel %vm1043, %v1171, 0
        %v1359 = vsel %vm1043, %v1173, 0
        %v1362 = vsel %vm1043, %v1175, 0
        %v1365 = vsel %vm1043, %v1177, 0
        %v1368 = vsel %vm1043, %v1179, 0
        %v1371 = vsel %vm1043, %v1181, 0
        %v1374 = vsel %vm1043, %v1183, 0
        %1376 = vmatpush.msra.mxu0 0.0
        %1377 = vmatpush.msra.mxu0 0.0
        %1378 = vmatpush.msra.mxu0 0.0
        %1379 = vmatpush.msra.mxu0 0.0
        %1380 = vmatpush.msra.mxu0 0.0
        %1381 = vmatpush.msra.mxu0 0.0
        %1382 = vmatpush.msra.mxu0 0.0
        %1383 = vmatpush.msra.mxu0 0.0
        %1384 = vmatpush.msra.mxu0 0.0
        %1385 = vmatpush.msra.mxu0 %v671
        %1386 = vmatpush.msra.mxu0 %v668
        %1387 = vmatpush.msra.mxu0 %v665
        %1388 = vmatpush.msra.mxu0 %v662
        %1389 = vmatpush.msra.mxu0 %v659
        %1390 = vmatpush.msra.mxu0 %v656
        %1391 = vmatpush.msra.mxu0 %v653
        %1392 = vmatmul.f32.gmra.mxu0 %v1356
        %v1393 = vpop.f32.mrf.mxu0
        %v1394 = vadd.f32 0.0, %v1393
        %1395 = vmatmul.f32.gmra.mxu0 %v1359
        %v1396 = vpop.f32.mrf.mxu0
        %v1397 = vadd.f32 0.0, %v1396
        %1398 = vmatmul.f32.gmra.mxu0 %v1362
        %v1399 = vpop.f32.mrf.mxu0
        %v1400 = vadd.f32 0.0, %v1399
        %1401 = vmatmul.f32.gmra.mxu0 %v1365
        %v1402 = vpop.f32.mrf.mxu0
        %v1403 = vadd.f32 0.0, %v1402
        %1404 = vmatmul.f32.gmra.mxu0 %v1368
        %v1405 = vpop.f32.mrf.mxu0
        %v1406 = vadd.f32 0.0, %v1405
        %1407 = vmatmul.f32.gmra.mxu0 %v1371
        %v1408 = vpop.f32.mrf.mxu0
        %v1409 = vadd.f32 0.0, %v1408
        %1410 = vmatmul.f32.gmra.mxu0 %v1374
        %v1411 = vpop.f32.mrf.mxu0
        %v1412 = vadd.f32 0.0, %v1411
        %1413 = vdwg.mxu0
        %v1415 = vsel %vm1043, %v1185, 0
        %v1418 = vsel %vm1043, %v1187, 0
        %v1421 = vsel %vm1043, %v1189, 0
        %v1424 = vsel %vm1043, %v1191, 0
        %v1427 = vsel %vm1043, %v1193, 0
        %v1430 = vsel %vm1043, %v1195, 0
        %v1433 = vsel %vm1043, %v1197, 0
        %1435 = vmatpush.msra.mxu0 0.0
        %1436 = vmatpush.msra.mxu0 0.0
        %1437 = vmatpush.msra.mxu0 0.0
        %1438 = vmatpush.msra.mxu0 0.0
        %1439 = vmatpush.msra.mxu0 0.0
        %1440 = vmatpush.msra.mxu0 0.0
        %1441 = vmatpush.msra.mxu0 0.0
        %1442 = vmatpush.msra.mxu0 0.0
        %1443 = vmatpush.msra.mxu0 0.0
        %1444 = vmatpush.msra.mxu0 %v692
        %1445 = vmatpush.msra.mxu0 %v689
        %1446 = vmatpush.msra.mxu0 %v686
        %1447 = vmatpush.msra.mxu0 %v683
        %1448 = vmatpush.msra.mxu0 %v680
        %1449 = vmatpush.msra.mxu0 %v677
        %1450 = vmatpush.msra.mxu0 %v674
        %1451 = vmatmul.f32.gmra.mxu0 %v1415
        %v1452 = vpop.f32.mrf.mxu0
        %v1453 = vadd.f32 0.0, %v1452
        %1454 = vmatmul.f32.gmra.mxu0 %v1418
        %v1455 = vpop.f32.mrf.mxu0
        %v1456 = vadd.f32 0.0, %v1455
        %1457 = vmatmul.f32.gmra.mxu0 %v1421
        %v1458 = vpop.f32.mrf.mxu0
        %v1459 = vadd.f32 0.0, %v1458
        %1460 = vmatmul.f32.gmra.mxu0 %v1424
        %v1461 = vpop.f32.mrf.mxu0
        %v1462 = vadd.f32 0.0, %v1461
        %1463 = vmatmul.f32.gmra.mxu0 %v1427
        %v1464 = vpop.f32.mrf.mxu0
        %v1465 = vadd.f32 0.0, %v1464
        %1466 = vmatmul.f32.gmra.mxu0 %v1430
        %v1467 = vpop.f32.mrf.mxu0
        %v1468 = vadd.f32 0.0, %v1467
        %1469 = vmatmul.f32.gmra.mxu0 %v1433
        %v1470 = vpop.f32.mrf.mxu0
        %v1471 = vadd.f32 0.0, %v1470
        %1472 = vdwg.mxu0
        %v1474 = vsel %vm1043, %v1199, 0
        %v1477 = vsel %vm1043, %v1201, 0
        %v1480 = vsel %vm1043, %v1203, 0
        %v1483 = vsel %vm1043, %v1205, 0
        %v1486 = vsel %vm1043, %v1207, 0
        %v1489 = vsel %vm1043, %v1209, 0
        %v1492 = vsel %vm1043, %v1211, 0
        %1494 = vmatpush.msra.mxu0 0.0
        %1495 = vmatpush.msra.mxu0 0.0
        %1496 = vmatpush.msra.mxu0 0.0
        %1497 = vmatpush.msra.mxu0 0.0
        %1498 = vmatpush.msra.mxu0 0.0
        %1499 = vmatpush.msra.mxu0 0.0
        %1500 = vmatpush.msra.mxu0 0.0
        %1501 = vmatpush.msra.mxu0 0.0
        %1502 = vmatpush.msra.mxu0 0.0
        %1503 = vmatpush.msra.mxu0 %v713
        %1504 = vmatpush.msra.mxu0 %v710
        %1505 = vmatpush.msra.mxu0 %v707
        %1506 = vmatpush.msra.mxu0 %v704
        %1507 = vmatpush.msra.mxu0 %v701
        %1508 = vmatpush.msra.mxu0 %v698
        %1509 = vmatpush.msra.mxu0 %v695
        %1510 = vmatmul.f32.gmra.mxu0 %v1474
        %v1511 = vpop.f32.mrf.mxu0
        %v1512 = vadd.f32 0.0, %v1511
        %1513 = vmatmul.f32.gmra.mxu0 %v1477
        %v1514 = vpop.f32.mrf.mxu0
        %v1515 = vadd.f32 0.0, %v1514
        %1516 = vmatmul.f32.gmra.mxu0 %v1480
        %v1517 = vpop.f32.mrf.mxu0
        %v1518 = vadd.f32 0.0, %v1517
        %1519 = vmatmul.f32.gmra.mxu0 %v1483
        %v1520 = vpop.f32.mrf.mxu0
        %v1521 = vadd.f32 0.0, %v1520
        %1522 = vmatmul.f32.gmra.mxu0 %v1486
        %v1523 = vpop.f32.mrf.mxu0
        %v1524 = vadd.f32 0.0, %v1523
        %1525 = vmatmul.f32.gmra.mxu0 %v1489
        %v1526 = vpop.f32.mrf.mxu0
        %v1527 = vadd.f32 0.0, %v1526
        %1528 = vmatmul.f32.gmra.mxu0 %v1492
        %v1529 = vpop.f32.mrf.mxu0
        %v1530 = vadd.f32 0.0, %v1529
        %1531 = vdwg.mxu0
        %v1532 = vrcp.pop %v1214
        %v1533 = vrcp.pop %v1217
        %v1534 = vrcp.pop %v1220
        %v1535 = vrcp.pop %v1223
        %v1536 = vrcp.pop %v1226
        %v1537 = vrcp.pop %v1229
        %v1538 = vrcp.pop %v1232
        %v1539 = vrcp.pop %v1235
        %v1540 = vrcp.pop %v1238
        %v1541 = vrcp.pop %v1241
        %v1542 = vrcp.pop %v1244
        %v1543 = vrcp.pop %v1247
        %v1544 = vrcp.pop %v1250
        %v1545 = vrcp.pop %v1253
        %v1546 = vrcp.pop %v1256
        %v1547 = vrcp.pop %v1259
        %v1548 = vrcp.pop %v1262
        %v1549 = vrcp.pop %v1265
        %v1550 = vrcp.pop %v1268
        %v1551 = vrcp.pop %v1271
        %v1552 = vrcp.pop %v1274
        %v1553 = vrcp.pop %v1277
        %v1554 = vrcp.pop %v1280
        %v1555 = vrcp.pop %v1283
        %v1556 = vrcp.pop %v1286
        %v1557 = vrcp.pop %v1289
        %v1558 = vrcp.pop %v1292
        %v1559 = vrcp.pop %v1295
        %v1560 = vmul.f32 %v1335, %v1532
        %v1561 = vmul.f32 %v1338, %v1533
        %v1562 = vmul.f32 %v1341, %v1534
        %v1563 = vmul.f32 %v1344, %v1535
        %v1564 = vmul.f32 %v1347, %v1536
        %v1565 = vmul.f32 %v1350, %v1537
        %v1566 = vmul.f32 %v1353, %v1538
        %v1567 = vmul.f32 %v1394, %v1539
        %v1568 = vmul.f32 %v1397, %v1540
        %v1569 = vmul.f32 %v1400, %v1541
        %v1570 = vmul.f32 %v1403, %v1542
        %v1571 = vmul.f32 %v1406, %v1543
        %v1572 = vmul.f32 %v1409, %v1544
        %v1573 = vmul.f32 %v1412, %v1545
        %v1574 = vmul.f32 %v1453, %v1546
        %v1575 = vmul.f32 %v1456, %v1547
        %v1576 = vmul.f32 %v1459, %v1548
        %v1577 = vmul.f32 %v1462, %v1549
        %v1578 = vmul.f32 %v1465, %v1550
        %v1579 = vmul.f32 %v1468, %v1551
        %v1580 = vmul.f32 %v1471, %v1552
        %v1581 = vmul.f32 %v1512, %v1553
        %v1582 = vmul.f32 %v1515, %v1554
        %v1583 = vmul.f32 %v1518, %v1555
        %v1584 = vmul.f32 %v1521, %v1556
        %v1585 = vmul.f32 %v1524, %v1557
        %v1586 = vmul.f32 %v1527, %v1558
        %v1587 = vmul.f32 %v1530, %v1559
        %v1588 = vld [vmem:[%s4] sm:$0xff]
        %v1589 = vld [vmem:[%s4 + $0x8] sm:$0xff]
        %v1590 = vld [vmem:[%s4 + $0x10] sm:$0xff]
        %v1591 = vld [vmem:[%s4 + $0x18] sm:$0xff]
        %s1592 = scalar_lea.vmem %s1, 64
        %v1593 = vld [vmem:[%s1592] sm:$0xff]
        %v1594 = vld [vmem:[%s1592 + $0x8] sm:$0xff]
        %v1595 = vld [vmem:[%s1592 + $0x10] sm:$0xff]
        %v1596 = vld [vmem:[%s1592 + $0x18] sm:$0xff]
        %v1597 = vld [vmem:[%s1592 + $0x20] sm:$0xff]
        %v1598 = vld [vmem:[%s1592 + $0x28] sm:$0xff]
        %v1599 = vld [vmem:[%s1592 + $0x30] sm:$0xff]
        %v1600 = vld [vmem:[%s1592 + $0x38] sm:$0xff]
        %1601 = vmatpush.msra.mxu0 0.0
        %1602 = vmatpush.msra.mxu0 0.0
        %1603 = vmatpush.msra.mxu0 0.0
        %1604 = vmatpush.msra.mxu0 0.0
        %1605 = vmatpush.msra.mxu0 0.0
        %1606 = vmatpush.msra.mxu0 0.0
        %1607 = vmatpush.msra.mxu0 0.0
        %1608 = vmatpush.msra.mxu0 0.0
        %1609 = vmatpush.msra.mxu0 %v1600
        %1610 = vmatpush.msra.mxu0 %v1599
        %1611 = vmatpush.msra.mxu0 %v1598
        %1612 = vmatpush.msra.mxu0 %v1597
        %1613 = vmatpush.msra.mxu0 %v1596
        %1614 = vmatpush.msra.mxu0 %v1595
        %1615 = vmatpush.msra.mxu0 %v1594
        %1616 = vmatpush.msra.mxu0 %v1593
        %1617 = vmatmul.f32.gmra.mxu0 %v313
        %v1618 = vpop.f32.mrf.mxu0
        %v1619 = vadd.f32 0.0, %v1618
        %1620 = vmatmul.f32.gmra.mxu0 %v316
        %v1621 = vpop.f32.mrf.mxu0
        %v1622 = vadd.f32 0.0, %v1621
        %1623 = vmatmul.f32.gmra.mxu0 %v319
        %v1624 = vpop.f32.mrf.mxu0
        %v1625 = vadd.f32 0.0, %v1624
        %1626 = vmatmul.f32.gmra.mxu0 %v322
        %v1627 = vpop.f32.mrf.mxu0
        %v1628 = vadd.f32 0.0, %v1627
        %1629 = vmatmul.f32.gmra.mxu0 %v325
        %v1630 = vpop.f32.mrf.mxu0
        %v1631 = vadd.f32 0.0, %v1630
        %1632 = vmatmul.f32.gmra.mxu0 %v328
        %v1633 = vpop.f32.mrf.mxu0
        %v1634 = vadd.f32 0.0, %v1633
        %1635 = vmatmul.f32.gmra.mxu0 %v331
        %v1636 = vpop.f32.mrf.mxu0
        %v1637 = vadd.f32 0.0, %v1636
        %1638 = vmatmul.f32.gmra.mxu0 %v334
        %v1639 = vpop.f32.mrf.mxu0
        %v1640 = vadd.f32 0.0, %v1639
        %1641 = vmatmul.f32.gmra.mxu0 %v337
        %v1642 = vpop.f32.mrf.mxu0
        %v1643 = vadd.f32 0.0, %v1642
        %1644 = vmatmul.f32.gmra.mxu0 %v340
        %v1645 = vpop.f32.mrf.mxu0
        %v1646 = vadd.f32 0.0, %v1645
        %1647 = vmatmul.f32.gmra.mxu0 %v343
        %v1648 = vpop.f32.mrf.mxu0
        %v1649 = vadd.f32 0.0, %v1648
        %1650 = vmatmul.f32.gmra.mxu0 %v346
        %v1651 = vpop.f32.mrf.mxu0
        %v1652 = vadd.f32 0.0, %v1651
        %1653 = vmatmul.f32.gmra.mxu0 %v349
        %v1654 = vpop.f32.mrf.mxu0
        %v1655 = vadd.f32 0.0, %v1654
        %1656 = vmatmul.f32.gmra.mxu0 %v352
        %v1657 = vpop.f32.mrf.mxu0
        %v1658 = vadd.f32 0.0, %v1657
        %1659 = vmatmul.f32.gmra.mxu0 %v355
        %v1660 = vpop.f32.mrf.mxu0
        %v1661 = vadd.f32 0.0, %v1660
        %1662 = vmatmul.f32.gmra.mxu0 %v358
        %v1663 = vpop.f32.mrf.mxu0
        %v1664 = vadd.f32 0.0, %v1663
        %1665 = vmatmul.f32.gmra.mxu0 %v361
        %v1666 = vpop.f32.mrf.mxu0
        %v1667 = vadd.f32 0.0, %v1666
        %1668 = vmatmul.f32.gmra.mxu0 %v364
        %v1669 = vpop.f32.mrf.mxu0
        %v1670 = vadd.f32 0.0, %v1669
        %1671 = vmatmul.f32.gmra.mxu0 %v367
        %v1672 = vpop.f32.mrf.mxu0
        %v1673 = vadd.f32 0.0, %v1672
        %1674 = vmatmul.f32.gmra.mxu0 %v370
        %v1675 = vpop.f32.mrf.mxu0
        %v1676 = vadd.f32 0.0, %v1675
        %1677 = vmatmul.f32.gmra.mxu0 %v373
        %v1678 = vpop.f32.mrf.mxu0
        %v1679 = vadd.f32 0.0, %v1678
        %1680 = vmatmul.f32.gmra.mxu0 %v376
        %v1681 = vpop.f32.mrf.mxu0
        %v1682 = vadd.f32 0.0, %v1681
        %1683 = vmatmul.f32.gmra.mxu0 %v379
        %v1684 = vpop.f32.mrf.mxu0
        %v1685 = vadd.f32 0.0, %v1684
        %1686 = vmatmul.f32.gmra.mxu0 %v382
        %v1687 = vpop.f32.mrf.mxu0
        %v1688 = vadd.f32 0.0, %v1687
        %1689 = vmatmul.f32.gmra.mxu0 %v385
        %v1690 = vpop.f32.mrf.mxu0
        %v1691 = vadd.f32 0.0, %v1690
        %1692 = vmatmul.f32.gmra.mxu0 %v388
        %v1693 = vpop.f32.mrf.mxu0
        %v1694 = vadd.f32 0.0, %v1693
        %1695 = vmatmul.f32.gmra.mxu0 %v391
        %v1696 = vpop.f32.mrf.mxu0
        %v1697 = vadd.f32 0.0, %v1696
        %1698 = vmatmul.f32.gmra.mxu0 %v394
        %v1699 = vpop.f32.mrf.mxu0
        %v1700 = vadd.f32 0.0, %v1699
        %1701 = vdwg.mxu0
        %s1702 = scalar_lea.vmem %s2, 64
        %v1703 = vld [vmem:[%s1702] sm:$0xff]
        %v1704 = vld [vmem:[%s1702 + $0x8] sm:$0xff]
        %v1705 = vld [vmem:[%s1702 + $0x10] sm:$0xff]
        %v1706 = vld [vmem:[%s1702 + $0x18] sm:$0xff]
        %v1707 = vld [vmem:[%s1702 + $0x20] sm:$0xff]
        %v1708 = vld [vmem:[%s1702 + $0x28] sm:$0xff]
        %v1709 = vld [vmem:[%s1702 + $0x30] sm:$0xff]
        %v1710 = vld [vmem:[%s1702 + $0x38] sm:$0xff]
        %1711 = vmatpush.msra.mxu0 0.0
        %1712 = vmatpush.msra.mxu0 0.0
        %1713 = vmatpush.msra.mxu0 0.0
        %1714 = vmatpush.msra.mxu0 0.0
        %1715 = vmatpush.msra.mxu0 0.0
        %1716 = vmatpush.msra.mxu0 0.0
        %1717 = vmatpush.msra.mxu0 0.0
        %1718 = vmatpush.msra.mxu0 0.0
        %1719 = vmatpush.msra.mxu0 %v1710
        %1720 = vmatpush.msra.mxu0 %v1709
        %1721 = vmatpush.msra.mxu0 %v1708
        %1722 = vmatpush.msra.mxu0 %v1707
        %1723 = vmatpush.msra.mxu0 %v1706
        %1724 = vmatpush.msra.mxu0 %v1705
        %1725 = vmatpush.msra.mxu0 %v1704
        %1726 = vmatpush.msra.mxu0 %v1703
        %1727 = vmatmul.f32.gmra.mxu0 %v313
        %v1728 = vpop.f32.mrf.mxu0
        %v1729 = vadd.f32 0.0, %v1728
        %1730 = vmatmul.f32.gmra.mxu0 %v316
        %v1731 = vpop.f32.mrf.mxu0
        %v1732 = vadd.f32 0.0, %v1731
        %1733 = vmatmul.f32.gmra.mxu0 %v319
        %v1734 = vpop.f32.mrf.mxu0
        %v1735 = vadd.f32 0.0, %v1734
        %1736 = vmatmul.f32.gmra.mxu0 %v322
        %v1737 = vpop.f32.mrf.mxu0
        %v1738 = vadd.f32 0.0, %v1737
        %1739 = vmatmul.f32.gmra.mxu0 %v325
        %v1740 = vpop.f32.mrf.mxu0
        %v1741 = vadd.f32 0.0, %v1740
        %1742 = vmatmul.f32.gmra.mxu0 %v328
        %v1743 = vpop.f32.mrf.mxu0
        %v1744 = vadd.f32 0.0, %v1743
        %1745 = vmatmul.f32.gmra.mxu0 %v331
        %v1746 = vpop.f32.mrf.mxu0
        %v1747 = vadd.f32 0.0, %v1746
        %1748 = vmatmul.f32.gmra.mxu0 %v334
        %v1749 = vpop.f32.mrf.mxu0
        %v1750 = vadd.f32 0.0, %v1749
        %1751 = vmatmul.f32.gmra.mxu0 %v337
        %v1752 = vpop.f32.mrf.mxu0
        %v1753 = vadd.f32 0.0, %v1752
        %1754 = vmatmul.f32.gmra.mxu0 %v340
        %v1755 = vpop.f32.mrf.mxu0
        %v1756 = vadd.f32 0.0, %v1755
        %1757 = vmatmul.f32.gmra.mxu0 %v343
        %v1758 = vpop.f32.mrf.mxu0
        %v1759 = vadd.f32 0.0, %v1758
        %1760 = vmatmul.f32.gmra.mxu0 %v346
        %v1761 = vpop.f32.mrf.mxu0
        %v1762 = vadd.f32 0.0, %v1761
        %1763 = vmatmul.f32.gmra.mxu0 %v349
        %v1764 = vpop.f32.mrf.mxu0
        %v1765 = vadd.f32 0.0, %v1764
        %1766 = vmatmul.f32.gmra.mxu0 %v352
        %v1767 = vpop.f32.mrf.mxu0
        %v1768 = vadd.f32 0.0, %v1767
        %1769 = vmatmul.f32.gmra.mxu0 %v355
        %v1770 = vpop.f32.mrf.mxu0
        %v1771 = vadd.f32 0.0, %v1770
        %1772 = vmatmul.f32.gmra.mxu0 %v358
        %v1773 = vpop.f32.mrf.mxu0
        %v1774 = vadd.f32 0.0, %v1773
        %1775 = vmatmul.f32.gmra.mxu0 %v361
        %v1776 = vpop.f32.mrf.mxu0
        %v1777 = vadd.f32 0.0, %v1776
        %1778 = vmatmul.f32.gmra.mxu0 %v364
        %v1779 = vpop.f32.mrf.mxu0
        %v1780 = vadd.f32 0.0, %v1779
        %1781 = vmatmul.f32.gmra.mxu0 %v367
        %v1782 = vpop.f32.mrf.mxu0
        %v1783 = vadd.f32 0.0, %v1782
        %1784 = vmatmul.f32.gmra.mxu0 %v370
        %v1785 = vpop.f32.mrf.mxu0
        %v1786 = vadd.f32 0.0, %v1785
        %1787 = vmatmul.f32.gmra.mxu0 %v373
        %v1788 = vpop.f32.mrf.mxu0
        %v1789 = vadd.f32 0.0, %v1788
        %1790 = vmatmul.f32.gmra.mxu0 %v376
        %v1791 = vpop.f32.mrf.mxu0
        %v1792 = vadd.f32 0.0, %v1791
        %1793 = vmatmul.f32.gmra.mxu0 %v379
        %v1794 = vpop.f32.mrf.mxu0
        %v1795 = vadd.f32 0.0, %v1794
        %1796 = vmatmul.f32.gmra.mxu0 %v382
        %v1797 = vpop.f32.mrf.mxu0
        %v1798 = vadd.f32 0.0, %v1797
        %1799 = vmatmul.f32.gmra.mxu0 %v385
        %v1800 = vpop.f32.mrf.mxu0
        %v1801 = vadd.f32 0.0, %v1800
        %1802 = vmatmul.f32.gmra.mxu0 %v388
        %v1803 = vpop.f32.mrf.mxu0
        %v1804 = vadd.f32 0.0, %v1803
        %1805 = vmatmul.f32.gmra.mxu0 %v391
        %v1806 = vpop.f32.mrf.mxu0
        %v1807 = vadd.f32 0.0, %v1806
        %1808 = vmatmul.f32.gmra.mxu0 %v394
        %v1809 = vpop.f32.mrf.mxu0
        %v1810 = vadd.f32 0.0, %v1809
        %1811 = vdwg.mxu0
        %s1812 = scalar_lea.vmem %s3, 64
        %v1813 = vld [vmem:[%s1812] sm:$0xff]
        %v1814 = vld [vmem:[%s1812 + $0x8] sm:$0xff]
        %v1815 = vld [vmem:[%s1812 + $0x10] sm:$0xff]
        %v1816 = vld [vmem:[%s1812 + $0x18] sm:$0xff]
        %v1817 = vld [vmem:[%s1812 + $0x20] sm:$0xff]
        %v1818 = vld [vmem:[%s1812 + $0x28] sm:$0xff]
        %v1819 = vld [vmem:[%s1812 + $0x30] sm:$0xff]
        %v1820 = vld [vmem:[%s1812 + $0x38] sm:$0xff]
        %1821 = vmatpush.msra.mxu0 0.0
        %1822 = vmatpush.msra.mxu0 0.0
        %1823 = vmatpush.msra.mxu0 0.0
        %1824 = vmatpush.msra.mxu0 0.0
        %1825 = vmatpush.msra.mxu0 0.0
        %1826 = vmatpush.msra.mxu0 0.0
        %1827 = vmatpush.msra.mxu0 0.0
        %1828 = vmatpush.msra.mxu0 0.0
        %1829 = vmatpush.msra.mxu0 %v1820
        %1830 = vmatpush.msra.mxu0 %v1819
        %1831 = vmatpush.msra.mxu0 %v1818
        %1832 = vmatpush.msra.mxu0 %v1817
        %1833 = vmatpush.msra.mxu0 %v1816
        %1834 = vmatpush.msra.mxu0 %v1815
        %1835 = vmatpush.msra.mxu0 %v1814
        %1836 = vmatpush.msra.mxu0 %v1813
        %1837 = vmatmul.f32.gmra.mxu0 %v313
        %v1838 = vpop.f32.mrf.mxu0
        %v1839 = vadd.f32 0.0, %v1838
        %1840 = vmatmul.f32.gmra.mxu0 %v316
        %v1841 = vpop.f32.mrf.mxu0
        %v1842 = vadd.f32 0.0, %v1841
        %1843 = vmatmul.f32.gmra.mxu0 %v319
        %v1844 = vpop.f32.mrf.mxu0
        %v1845 = vadd.f32 0.0, %v1844
        %1846 = vmatmul.f32.gmra.mxu0 %v322
        %v1847 = vpop.f32.mrf.mxu0
        %v1848 = vadd.f32 0.0, %v1847
        %1849 = vmatmul.f32.gmra.mxu0 %v325
        %v1850 = vpop.f32.mrf.mxu0
        %v1851 = vadd.f32 0.0, %v1850
        %1852 = vmatmul.f32.gmra.mxu0 %v328
        %v1853 = vpop.f32.mrf.mxu0
        %v1854 = vadd.f32 0.0, %v1853
        %1855 = vmatmul.f32.gmra.mxu0 %v331
        %v1856 = vpop.f32.mrf.mxu0
        %v1857 = vadd.f32 0.0, %v1856
        %1858 = vmatmul.f32.gmra.mxu0 %v334
        %v1859 = vpop.f32.mrf.mxu0
        %v1860 = vadd.f32 0.0, %v1859
        %1861 = vmatmul.f32.gmra.mxu0 %v337
        %v1862 = vpop.f32.mrf.mxu0
        %v1863 = vadd.f32 0.0, %v1862
        %1864 = vmatmul.f32.gmra.mxu0 %v340
        %v1865 = vpop.f32.mrf.mxu0
        %v1866 = vadd.f32 0.0, %v1865
        %1867 = vmatmul.f32.gmra.mxu0 %v343
        %v1868 = vpop.f32.mrf.mxu0
        %v1869 = vadd.f32 0.0, %v1868
        %1870 = vmatmul.f32.gmra.mxu0 %v346
        %v1871 = vpop.f32.mrf.mxu0
        %v1872 = vadd.f32 0.0, %v1871
        %1873 = vmatmul.f32.gmra.mxu0 %v349
        %v1874 = vpop.f32.mrf.mxu0
        %v1875 = vadd.f32 0.0, %v1874
        %1876 = vmatmul.f32.gmra.mxu0 %v352
        %v1877 = vpop.f32.mrf.mxu0
        %v1878 = vadd.f32 0.0, %v1877
        %1879 = vmatmul.f32.gmra.mxu0 %v355
        %v1880 = vpop.f32.mrf.mxu0
        %v1881 = vadd.f32 0.0, %v1880
        %1882 = vmatmul.f32.gmra.mxu0 %v358
        %v1883 = vpop.f32.mrf.mxu0
        %v1884 = vadd.f32 0.0, %v1883
        %1885 = vmatmul.f32.gmra.mxu0 %v361
        %v1886 = vpop.f32.mrf.mxu0
        %v1887 = vadd.f32 0.0, %v1886
        %1888 = vmatmul.f32.gmra.mxu0 %v364
        %v1889 = vpop.f32.mrf.mxu0
        %v1890 = vadd.f32 0.0, %v1889
        %1891 = vmatmul.f32.gmra.mxu0 %v367
        %v1892 = vpop.f32.mrf.mxu0
        %v1893 = vadd.f32 0.0, %v1892
        %1894 = vmatmul.f32.gmra.mxu0 %v370
        %v1895 = vpop.f32.mrf.mxu0
        %v1896 = vadd.f32 0.0, %v1895
        %1897 = vmatmul.f32.gmra.mxu0 %v373
        %v1898 = vpop.f32.mrf.mxu0
        %v1899 = vadd.f32 0.0, %v1898
        %1900 = vmatmul.f32.gmra.mxu0 %v376
        %v1901 = vpop.f32.mrf.mxu0
        %v1902 = vadd.f32 0.0, %v1901
        %1903 = vmatmul.f32.gmra.mxu0 %v379
        %v1904 = vpop.f32.mrf.mxu0
        %v1905 = vadd.f32 0.0, %v1904
        %1906 = vmatmul.f32.gmra.mxu0 %v382
        %v1907 = vpop.f32.mrf.mxu0
        %v1908 = vadd.f32 0.0, %v1907
        %1909 = vmatmul.f32.gmra.mxu0 %v385
        %v1910 = vpop.f32.mrf.mxu0
        %v1911 = vadd.f32 0.0, %v1910
        %1912 = vmatmul.f32.gmra.mxu0 %v388
        %v1913 = vpop.f32.mrf.mxu0
        %v1914 = vadd.f32 0.0, %v1913
        %1915 = vmatmul.f32.gmra.mxu0 %v391
        %v1916 = vpop.f32.mrf.mxu0
        %v1917 = vadd.f32 0.0, %v1916
        %1918 = vmatmul.f32.gmra.mxu0 %v394
        %v1919 = vpop.f32.mrf.mxu0
        %v1920 = vadd.f32 0.0, %v1919
        %1921 = vdwg.mxu0
        %s1922 = scalar_lea.vmem %s5, 56
        %v1923 = vld [vmem:[%s1922] sm:$0xff]
        %v1924 = vld [vmem:[%s1922 + $0x8] sm:$0xff]
        %v1925 = vld [vmem:[%s1922 + $0x10] sm:$0xff]
        %v1926 = vld [vmem:[%s1922 + $0x18] sm:$0xff]
        %v1927 = vld [vmem:[%s1922 + $0x20] sm:$0xff]
        %v1928 = vld [vmem:[%s1922 + $0x28] sm:$0xff]
        %v1929 = vld [vmem:[%s1922 + $0x30] sm:$0xff]
        %v1931 = vsel %vm722, %v1619, 0
        %v1934 = vsel %vm722, %v1622, 0
        %v1937 = vsel %vm722, %v1625, 0
        %v1940 = vsel %vm722, %v1628, 0
        %v1943 = vsel %vm722, %v1631, 0
        %v1946 = vsel %vm722, %v1634, 0
        %v1949 = vsel %vm722, %v1637, 0
        %v1952 = vsel %vm722, %v1729, 0
        %v1955 = vsel %vm722, %v1732, 0
        %v1958 = vsel %vm722, %v1735, 0
        %v1961 = vsel %vm722, %v1738, 0
        %v1964 = vsel %vm722, %v1741, 0
        %v1967 = vsel %vm722, %v1744, 0
        %v1970 = vsel %vm722, %v1747, 0
        %1972 = vmatpush.xpose.msra.mxu0 0.0
        %1973 = vmatpush.xpose.msra.mxu0 0.0
        %1974 = vmatpush.xpose.msra.mxu0 0.0
        %1975 = vmatpush.xpose.msra.mxu0 0.0
        %1976 = vmatpush.xpose.msra.mxu0 0.0
        %1977 = vmatpush.xpose.msra.mxu0 0.0
        %1978 = vmatpush.xpose.msra.mxu0 0.0
        %1979 = vmatpush.xpose.msra.mxu0 0.0
        %1980 = vmatpush.xpose.msra.mxu0 0.0
        %1981 = vmatpush.xpose.msra.mxu0 %v1970
        %1982 = vmatpush.xpose.msra.mxu0 %v1967
        %1983 = vmatpush.xpose.msra.mxu0 %v1964
        %1984 = vmatpush.xpose.msra.mxu0 %v1961
        %1985 = vmatpush.xpose.msra.mxu0 %v1958
        %1986 = vmatpush.xpose.msra.mxu0 %v1955
        %1987 = vmatpush.xpose.msra.mxu0 %v1952
        %1988 = vmatmul.f32.gmra.mxu0 %v1931
        %v1989 = vpop.f32.mrf.mxu0
        %v1990 = vadd.f32 %v1923, %v1989
        %1991 = vmatmul.f32.gmra.mxu0 %v1934
        %v1992 = vpop.f32.mrf.mxu0
        %v1993 = vadd.f32 %v1924, %v1992
        %1994 = vmatmul.f32.gmra.mxu0 %v1937
        %v1995 = vpop.f32.mrf.mxu0
        %v1996 = vadd.f32 %v1925, %v1995
        %1997 = vmatmul.f32.gmra.mxu0 %v1940
        %v1998 = vpop.f32.mrf.mxu0
        %v1999 = vadd.f32 %v1926, %v1998
        %2000 = vmatmul.f32.gmra.mxu0 %v1943
        %v2001 = vpop.f32.mrf.mxu0
        %v2002 = vadd.f32 %v1927, %v2001
        %2003 = vmatmul.f32.gmra.mxu0 %v1946
        %v2004 = vpop.f32.mrf.mxu0
        %v2005 = vadd.f32 %v1928, %v2004
        %2006 = vmatmul.f32.gmra.mxu0 %v1949
        %v2007 = vpop.f32.mrf.mxu0
        %v2008 = vadd.f32 %v1929, %v2007
        %2009 = vdwg.mxu0
        %v2011 = vsel %vm722, %v1640, 0
        %v2014 = vsel %vm722, %v1643, 0
        %v2017 = vsel %vm722, %v1646, 0
        %v2020 = vsel %vm722, %v1649, 0
        %v2023 = vsel %vm722, %v1652, 0
        %v2026 = vsel %vm722, %v1655, 0
        %v2029 = vsel %vm722, %v1658, 0
        %v2032 = vsel %vm722, %v1750, 0
        %v2035 = vsel %vm722, %v1753, 0
        %v2038 = vsel %vm722, %v1756, 0
        %v2041 = vsel %vm722, %v1759, 0
        %v2044 = vsel %vm722, %v1762, 0
        %v2047 = vsel %vm722, %v1765, 0
        %v2050 = vsel %vm722, %v1768, 0
        %2052 = vmatpush.xpose.msra.mxu0 0.0
        %2053 = vmatpush.xpose.msra.mxu0 0.0
        %2054 = vmatpush.xpose.msra.mxu0 0.0
        %2055 = vmatpush.xpose.msra.mxu0 0.0
        %2056 = vmatpush.xpose.msra.mxu0 0.0
        %2057 = vmatpush.xpose.msra.mxu0 0.0
        %2058 = vmatpush.xpose.msra.mxu0 0.0
        %2059 = vmatpush.xpose.msra.mxu0 0.0
        %2060 = vmatpush.xpose.msra.mxu0 0.0
        %2061 = vmatpush.xpose.msra.mxu0 %v2050
        %2062 = vmatpush.xpose.msra.mxu0 %v2047
        %2063 = vmatpush.xpose.msra.mxu0 %v2044
        %2064 = vmatpush.xpose.msra.mxu0 %v2041
        %2065 = vmatpush.xpose.msra.mxu0 %v2038
        %2066 = vmatpush.xpose.msra.mxu0 %v2035
        %2067 = vmatpush.xpose.msra.mxu0 %v2032
        %2068 = vmatmul.f32.gmra.mxu0 %v2011
        %v2069 = vpop.f32.mrf.mxu0
        %v2070 = vadd.f32 %v1923, %v2069
        %2071 = vmatmul.f32.gmra.mxu0 %v2014
        %v2072 = vpop.f32.mrf.mxu0
        %v2073 = vadd.f32 %v1924, %v2072
        %2074 = vmatmul.f32.gmra.mxu0 %v2017
        %v2075 = vpop.f32.mrf.mxu0
        %v2076 = vadd.f32 %v1925, %v2075
        %2077 = vmatmul.f32.gmra.mxu0 %v2020
        %v2078 = vpop.f32.mrf.mxu0
        %v2079 = vadd.f32 %v1926, %v2078
        %2080 = vmatmul.f32.gmra.mxu0 %v2023
        %v2081 = vpop.f32.mrf.mxu0
        %v2082 = vadd.f32 %v1927, %v2081
        %2083 = vmatmul.f32.gmra.mxu0 %v2026
        %v2084 = vpop.f32.mrf.mxu0
        %v2085 = vadd.f32 %v1928, %v2084
        %2086 = vmatmul.f32.gmra.mxu0 %v2029
        %v2087 = vpop.f32.mrf.mxu0
        %v2088 = vadd.f32 %v1929, %v2087
        %2089 = vdwg.mxu0
        %v2091 = vsel %vm722, %v1661, 0
        %v2094 = vsel %vm722, %v1664, 0
        %v2097 = vsel %vm722, %v1667, 0
        %v2100 = vsel %vm722, %v1670, 0
        %v2103 = vsel %vm722, %v1673, 0
        %v2106 = vsel %vm722, %v1676, 0
        %v2109 = vsel %vm722, %v1679, 0
        %v2112 = vsel %vm722, %v1771, 0
        %v2115 = vsel %vm722, %v1774, 0
        %v2118 = vsel %vm722, %v1777, 0
        %v2121 = vsel %vm722, %v1780, 0
        %v2124 = vsel %vm722, %v1783, 0
        %v2127 = vsel %vm722, %v1786, 0
        %v2130 = vsel %vm722, %v1789, 0
        %2132 = vmatpush.xpose.msra.mxu0 0.0
        %2133 = vmatpush.xpose.msra.mxu0 0.0
        %2134 = vmatpush.xpose.msra.mxu0 0.0
        %2135 = vmatpush.xpose.msra.mxu0 0.0
        %2136 = vmatpush.xpose.msra.mxu0 0.0
        %2137 = vmatpush.xpose.msra.mxu0 0.0
        %2138 = vmatpush.xpose.msra.mxu0 0.0
        %2139 = vmatpush.xpose.msra.mxu0 0.0
        %2140 = vmatpush.xpose.msra.mxu0 0.0
        %2141 = vmatpush.xpose.msra.mxu0 %v2130
        %2142 = vmatpush.xpose.msra.mxu0 %v2127
        %2143 = vmatpush.xpose.msra.mxu0 %v2124
        %2144 = vmatpush.xpose.msra.mxu0 %v2121
        %2145 = vmatpush.xpose.msra.mxu0 %v2118
        %2146 = vmatpush.xpose.msra.mxu0 %v2115
        %2147 = vmatpush.xpose.msra.mxu0 %v2112
        %2148 = vmatmul.f32.gmra.mxu0 %v2091
        %v2149 = vpop.f32.mrf.mxu0
        %v2150 = vadd.f32 %v1923, %v2149
        %2151 = vmatmul.f32.gmra.mxu0 %v2094
        %v2152 = vpop.f32.mrf.mxu0
        %v2153 = vadd.f32 %v1924, %v2152
        %2154 = vmatmul.f32.gmra.mxu0 %v2097
        %v2155 = vpop.f32.mrf.mxu0
        %v2156 = vadd.f32 %v1925, %v2155
        %2157 = vmatmul.f32.gmra.mxu0 %v2100
        %v2158 = vpop.f32.mrf.mxu0
        %v2159 = vadd.f32 %v1926, %v2158
        %2160 = vmatmul.f32.gmra.mxu0 %v2103
        %v2161 = vpop.f32.mrf.mxu0
        %v2162 = vadd.f32 %v1927, %v2161
        %2163 = vmatmul.f32.gmra.mxu0 %v2106
        %v2164 = vpop.f32.mrf.mxu0
        %v2165 = vadd.f32 %v1928, %v2164
        %2166 = vmatmul.f32.gmra.mxu0 %v2109
        %v2167 = vpop.f32.mrf.mxu0
        %v2168 = vadd.f32 %v1929, %v2167
        %2169 = vdwg.mxu0
        %v2171 = vsel %vm722, %v1682, 0
        %v2174 = vsel %vm722, %v1685, 0
        %v2177 = vsel %vm722, %v1688, 0
        %v2180 = vsel %vm722, %v1691, 0
        %v2183 = vsel %vm722, %v1694, 0
        %v2186 = vsel %vm722, %v1697, 0
        %v2189 = vsel %vm722, %v1700, 0
        %v2192 = vsel %vm722, %v1792, 0
        %v2195 = vsel %vm722, %v1795, 0
        %v2198 = vsel %vm722, %v1798, 0
        %v2201 = vsel %vm722, %v1801, 0
        %v2204 = vsel %vm722, %v1804, 0
        %v2207 = vsel %vm722, %v1807, 0
        %v2210 = vsel %vm722, %v1810, 0
        %2212 = vmatpush.xpose.msra.mxu0 0.0
        %2213 = vmatpush.xpose.msra.mxu0 0.0
        %2214 = vmatpush.xpose.msra.mxu0 0.0
        %2215 = vmatpush.xpose.msra.mxu0 0.0
        %2216 = vmatpush.xpose.msra.mxu0 0.0
        %2217 = vmatpush.xpose.msra.mxu0 0.0
        %2218 = vmatpush.xpose.msra.mxu0 0.0
        %2219 = vmatpush.xpose.msra.mxu0 0.0
        %2220 = vmatpush.xpose.msra.mxu0 0.0
        %2221 = vmatpush.xpose.msra.mxu0 %v2210
        %2222 = vmatpush.xpose.msra.mxu0 %v2207
        %2223 = vmatpush.xpose.msra.mxu0 %v2204
        %2224 = vmatpush.xpose.msra.mxu0 %v2201
        %2225 = vmatpush.xpose.msra.mxu0 %v2198
        %2226 = vmatpush.xpose.msra.mxu0 %v2195
        %2227 = vmatpush.xpose.msra.mxu0 %v2192
        %2228 = vmatmul.f32.gmra.mxu0 %v2171
        %v2229 = vpop.f32.mrf.mxu0
        %v2230 = vadd.f32 %v1923, %v2229
        %2231 = vmatmul.f32.gmra.mxu0 %v2174
        %v2232 = vpop.f32.mrf.mxu0
        %v2233 = vadd.f32 %v1924, %v2232
        %2234 = vmatmul.f32.gmra.mxu0 %v2177
        %v2235 = vpop.f32.mrf.mxu0
        %v2236 = vadd.f32 %v1925, %v2235
        %2237 = vmatmul.f32.gmra.mxu0 %v2180
        %v2238 = vpop.f32.mrf.mxu0
        %v2239 = vadd.f32 %v1926, %v2238
        %2240 = vmatmul.f32.gmra.mxu0 %v2183
        %v2241 = vpop.f32.mrf.mxu0
        %v2242 = vadd.f32 %v1927, %v2241
        %2243 = vmatmul.f32.gmra.mxu0 %v2186
        %v2244 = vpop.f32.mrf.mxu0
        %v2245 = vadd.f32 %v1928, %v2244
        %2246 = vmatmul.f32.gmra.mxu0 %v2189
        %v2247 = vpop.f32.mrf.mxu0
        %v2248 = vadd.f32 %v1929, %v2247
        %2249 = vdwg.mxu0
        %v2250 = vsel %vm1043, %v1990, -inf
        %2251 = vmax.xlane.f32.xlu0 %v2250
        %v2252 = vpop.xlane.xlu0 %2251
        %v2253 = vsel %vm1043, %v1993, -inf
        %2254 = vmax.xlane.f32.xlu0 %v2253
        %v2255 = vpop.xlane.xlu0 %2254
        %v2256 = vsel %vm1043, %v1996, -inf
        %2257 = vmax.xlane.f32.xlu0 %v2256
        %v2258 = vpop.xlane.xlu0 %2257
        %v2259 = vsel %vm1043, %v1999, -inf
        %2260 = vmax.xlane.f32.xlu0 %v2259
        %v2261 = vpop.xlane.xlu0 %2260
        %v2262 = vsel %vm1043, %v2002, -inf
        %2263 = vmax.xlane.f32.xlu0 %v2262
        %v2264 = vpop.xlane.xlu0 %2263
        %v2265 = vsel %vm1043, %v2005, -inf
        %2266 = vmax.xlane.f32.xlu0 %v2265
        %v2267 = vpop.xlane.xlu0 %2266
        %v2268 = vsel %vm1043, %v2008, -inf
        %2269 = vmax.xlane.f32.xlu0 %v2268
        %v2270 = vpop.xlane.xlu0 %2269
        %v2271 = vsel %vm1043, %v2070, -inf
        %2272 = vmax.xlane.f32.xlu0 %v2271
        %v2273 = vpop.xlane.xlu0 %2272
        %v2274 = vsel %vm1043, %v2073, -inf
        %2275 = vmax.xlane.f32.xlu0 %v2274
        %v2276 = vpop.xlane.xlu0 %2275
        %v2277 = vsel %vm1043, %v2076, -inf
        %2278 = vmax.xlane.f32.xlu0 %v2277
        %v2279 = vpop.xlane.xlu0 %2278
        %v2280 = vsel %vm1043, %v2079, -inf
        %2281 = vmax.xlane.f32.xlu0 %v2280
        %v2282 = vpop.xlane.xlu0 %2281
        %v2283 = vsel %vm1043, %v2082, -inf
        %2284 = vmax.xlane.f32.xlu0 %v2283
        %v2285 = vpop.xlane.xlu0 %2284
        %v2286 = vsel %vm1043, %v2085, -inf
        %2287 = vmax.xlane.f32.xlu0 %v2286
        %v2288 = vpop.xlane.xlu0 %2287
        %v2289 = vsel %vm1043, %v2088, -inf
        %2290 = vmax.xlane.f32.xlu0 %v2289
        %v2291 = vpop.xlane.xlu0 %2290
        %v2292 = vsel %vm1043, %v2150, -inf
        %2293 = vmax.xlane.f32.xlu0 %v2292
        %v2294 = vpop.xlane.xlu0 %2293
        %v2295 = vsel %vm1043, %v2153, -inf
        %2296 = vmax.xlane.f32.xlu0 %v2295
        %v2297 = vpop.xlane.xlu0 %2296
        %v2298 = vsel %vm1043, %v2156, -inf
        %2299 = vmax.xlane.f32.xlu0 %v2298
        %v2300 = vpop.xlane.xlu0 %2299
        %v2301 = vsel %vm1043, %v2159, -inf
        %2302 = vmax.xlane.f32.xlu0 %v2301
        %v2303 = vpop.xlane.xlu0 %2302
        %v2304 = vsel %vm1043, %v2162, -inf
        %2305 = vmax.xlane.f32.xlu0 %v2304
        %v2306 = vpop.xlane.xlu0 %2305
        %v2307 = vsel %vm1043, %v2165, -inf
        %2308 = vmax.xlane.f32.xlu0 %v2307
        %v2309 = vpop.xlane.xlu0 %2308
        %v2310 = vsel %vm1043, %v2168, -inf
        %2311 = vmax.xlane.f32.xlu0 %v2310
        %v2312 = vpop.xlane.xlu0 %2311
        %v2313 = vsel %vm1043, %v2230, -inf
        %2314 = vmax.xlane.f32.xlu0 %v2313
        %v2315 = vpop.xlane.xlu0 %2314
        %v2316 = vsel %vm1043, %v2233, -inf
        %2317 = vmax.xlane.f32.xlu0 %v2316
        %v2318 = vpop.xlane.xlu0 %2317
        %v2319 = vsel %vm1043, %v2236, -inf
        %2320 = vmax.xlane.f32.xlu0 %v2319
        %v2321 = vpop.xlane.xlu0 %2320
        %v2322 = vsel %vm1043, %v2239, -inf
        %2323 = vmax.xlane.f32.xlu0 %v2322
        %v2324 = vpop.xlane.xlu0 %2323
        %v2325 = vsel %vm1043, %v2242, -inf
        %2326 = vmax.xlane.f32.xlu0 %v2325
        %v2327 = vpop.xlane.xlu0 %2326
        %v2328 = vsel %vm1043, %v2245, -inf
        %2329 = vmax.xlane.f32.xlu0 %v2328
        %v2330 = vpop.xlane.xlu0 %2329
        %v2331 = vsel %vm1043, %v2248, -inf
        %2332 = vmax.xlane.f32.xlu0 %v2331
        %v2333 = vpop.xlane.xlu0 %2332
        %v2334 = vsub.f32 %v1990, %v2252
        %v2335 = vsub.f32 %v1993, %v2255
        %v2336 = vsub.f32 %v1996, %v2258
        %v2337 = vsub.f32 %v1999, %v2261
        %v2338 = vsub.f32 %v2002, %v2264
        %v2339 = vsub.f32 %v2005, %v2267
        %v2340 = vsub.f32 %v2008, %v2270
        %v2341 = vsub.f32 %v2070, %v2273
        %v2342 = vsub.f32 %v2073, %v2276
        %v2343 = vsub.f32 %v2076, %v2279
        %v2344 = vsub.f32 %v2079, %v2282
        %v2345 = vsub.f32 %v2082, %v2285
        %v2346 = vsub.f32 %v2085, %v2288
        %v2347 = vsub.f32 %v2088, %v2291
        %v2348 = vsub.f32 %v2150, %v2294
        %v2349 = vsub.f32 %v2153, %v2297
        %v2350 = vsub.f32 %v2156, %v2300
        %v2351 = vsub.f32 %v2159, %v2303
        %v2352 = vsub.f32 %v2162, %v2306
        %v2353 = vsub.f32 %v2165, %v2309
        %v2354 = vsub.f32 %v2168, %v2312
        %v2355 = vsub.f32 %v2230, %v2315
        %v2356 = vsub.f32 %v2233, %v2318
        %v2357 = vsub.f32 %v2236, %v2321
        %v2358 = vsub.f32 %v2239, %v2324
        %v2359 = vsub.f32 %v2242, %v2327
        %v2360 = vsub.f32 %v2245, %v2330
        %v2361 = vsub.f32 %v2248, %v2333
        %v2362 = vmul.f32 %v2334, 1.442695
        %v2363 = vpow.pop %v2362
        %v2364 = vmul.f32 %v2335, 1.442695
        %v2365 = vpow.pop %v2364
        %v2366 = vmul.f32 %v2336, 1.442695
        %v2367 = vpow.pop %v2366
        %v2368 = vmul.f32 %v2337, 1.442695
        %v2369 = vpow.pop %v2368
        %v2370 = vmul.f32 %v2338, 1.442695
        %v2371 = vpow.pop %v2370
        %v2372 = vmul.f32 %v2339, 1.442695
        %v2373 = vpow.pop %v2372
        %v2374 = vmul.f32 %v2340, 1.442695
        %v2375 = vpow.pop %v2374
        %v2376 = vmul.f32 %v2341, 1.442695
        %v2377 = vpow.pop %v2376
        %v2378 = vmul.f32 %v2342, 1.442695
        %v2379 = vpow.pop %v2378
        %v2380 = vmul.f32 %v2343, 1.442695
        %v2381 = vpow.pop %v2380
        %v2382 = vmul.f32 %v2344, 1.442695
        %v2383 = vpow.pop %v2382
        %v2384 = vmul.f32 %v2345, 1.442695
        %v2385 = vpow.pop %v2384
        %v2386 = vmul.f32 %v2346, 1.442695
        %v2387 = vpow.pop %v2386
        %v2388 = vmul.f32 %v2347, 1.442695
        %v2389 = vpow.pop %v2388
        %v2390 = vmul.f32 %v2348, 1.442695
        %v2391 = vpow.pop %v2390
        %v2392 = vmul.f32 %v2349, 1.442695
        %v2393 = vpow.pop %v2392
        %v2394 = vmul.f32 %v2350, 1.442695
        %v2395 = vpow.pop %v2394
        %v2396 = vmul.f32 %v2351, 1.442695
        %v2397 = vpow.pop %v2396
        %v2398 = vmul.f32 %v2352, 1.442695
        %v2399 = vpow.pop %v2398
        %v2400 = vmul.f32 %v2353, 1.442695
        %v2401 = vpow.pop %v2400
        %v2402 = vmul.f32 %v2354, 1.442695
        %v2403 = vpow.pop %v2402
        %v2404 = vmul.f32 %v2355, 1.442695
        %v2405 = vpow.pop %v2404
        %v2406 = vmul.f32 %v2356, 1.442695
        %v2407 = vpow.pop %v2406
        %v2408 = vmul.f32 %v2357, 1.442695
        %v2409 = vpow.pop %v2408
        %v2410 = vmul.f32 %v2358, 1.442695
        %v2411 = vpow.pop %v2410
        %v2412 = vmul.f32 %v2359, 1.442695
        %v2413 = vpow.pop %v2412
        %v2414 = vmul.f32 %v2360, 1.442695
        %v2415 = vpow.pop %v2414
        %v2416 = vmul.f32 %v2361, 1.442695
        %v2417 = vpow.pop %v2416
        %v2418 = vsel %vm1043, %v2363, 0.0
        %2419 = vadd.xlane.f32.xlu0 %v2418
        %v2420 = vpop.xlane.xlu0 %2419
        %v2421 = vsel %vm1043, %v2365, 0.0
        %2422 = vadd.xlane.f32.xlu0 %v2421
        %v2423 = vpop.xlane.xlu0 %2422
        %v2424 = vsel %vm1043, %v2367, 0.0
        %2425 = vadd.xlane.f32.xlu0 %v2424
        %v2426 = vpop.xlane.xlu0 %2425
        %v2427 = vsel %vm1043, %v2369, 0.0
        %2428 = vadd.xlane.f32.xlu0 %v2427
        %v2429 = vpop.xlane.xlu0 %2428
        %v2430 = vsel %vm1043, %v2371, 0.0
        %2431 = vadd.xlane.f32.xlu0 %v2430
        %v2432 = vpop.xlane.xlu0 %2431
        %v2433 = vsel %vm1043, %v2373, 0.0
        %2434 = vadd.xlane.f32.xlu0 %v2433
        %v2435 = vpop.xlane.xlu0 %2434
        %v2436 = vsel %vm1043, %v2375, 0.0
        %2437 = vadd.xlane.f32.xlu0 %v2436
        %v2438 = vpop.xlane.xlu0 %2437
        %v2439 = vsel %vm1043, %v2377, 0.0
        %2440 = vadd.xlane.f32.xlu0 %v2439
        %v2441 = vpop.xlane.xlu0 %2440
        %v2442 = vsel %vm1043, %v2379, 0.0
        %2443 = vadd.xlane.f32.xlu0 %v2442
        %v2444 = vpop.xlane.xlu0 %2443
        %v2445 = vsel %vm1043, %v2381, 0.0
        %2446 = vadd.xlane.f32.xlu0 %v2445
        %v2447 = vpop.xlane.xlu0 %2446
        %v2448 = vsel %vm1043, %v2383, 0.0
        %2449 = vadd.xlane.f32.xlu0 %v2448
        %v2450 = vpop.xlane.xlu0 %2449
        %v2451 = vsel %vm1043, %v2385, 0.0
        %2452 = vadd.xlane.f32.xlu0 %v2451
        %v2453 = vpop.xlane.xlu0 %2452
        %v2454 = vsel %vm1043, %v2387, 0.0
        %2455 = vadd.xlane.f32.xlu0 %v2454
        %v2456 = vpop.xlane.xlu0 %2455
        %v2457 = vsel %vm1043, %v2389, 0.0
        %2458 = vadd.xlane.f32.xlu0 %v2457
        %v2459 = vpop.xlane.xlu0 %2458
        %v2460 = vsel %vm1043, %v2391, 0.0
        %2461 = vadd.xlane.f32.xlu0 %v2460
        %v2462 = vpop.xlane.xlu0 %2461
        %v2463 = vsel %vm1043, %v2393, 0.0
        %2464 = vadd.xlane.f32.xlu0 %v2463
        %v2465 = vpop.xlane.xlu0 %2464
        %v2466 = vsel %vm1043, %v2395, 0.0
        %2467 = vadd.xlane.f32.xlu0 %v2466
        %v2468 = vpop.xlane.xlu0 %2467
        %v2469 = vsel %vm1043, %v2397, 0.0
        %2470 = vadd.xlane.f32.xlu0 %v2469
        %v2471 = vpop.xlane.xlu0 %2470
        %v2472 = vsel %vm1043, %v2399, 0.0
        %2473 = vadd.xlane.f32.xlu0 %v2472
        %v2474 = vpop.xlane.xlu0 %2473
        %v2475 = vsel %vm1043, %v2401, 0.0
        %2476 = vadd.xlane.f32.xlu0 %v2475
        %v2477 = vpop.xlane.xlu0 %2476
        %v2478 = vsel %vm1043, %v2403, 0.0
        %2479 = vadd.xlane.f32.xlu0 %v2478
        %v2480 = vpop.xlane.xlu0 %2479
        %v2481 = vsel %vm1043, %v2405, 0.0
        %2482 = vadd.xlane.f32.xlu0 %v2481
        %v2483 = vpop.xlane.xlu0 %2482
        %v2484 = vsel %vm1043, %v2407, 0.0
        %2485 = vadd.xlane.f32.xlu0 %v2484
        %v2486 = vpop.xlane.xlu0 %2485
        %v2487 = vsel %vm1043, %v2409, 0.0
        %2488 = vadd.xlane.f32.xlu0 %v2487
        %v2489 = vpop.xlane.xlu0 %2488
        %v2490 = vsel %vm1043, %v2411, 0.0
        %2491 = vadd.xlane.f32.xlu0 %v2490
        %v2492 = vpop.xlane.xlu0 %2491
        %v2493 = vsel %vm1043, %v2413, 0.0
        %2494 = vadd.xlane.f32.xlu0 %v2493
        %v2495 = vpop.xlane.xlu0 %2494
        %v2496 = vsel %vm1043, %v2415, 0.0
        %2497 = vadd.xlane.f32.xlu0 %v2496
        %v2498 = vpop.xlane.xlu0 %2497
        %v2499 = vsel %vm1043, %v2417, 0.0
        %2500 = vadd.xlane.f32.xlu0 %v2499
        %v2501 = vpop.xlane.xlu0 %2500
        %v2503 = vsel %vm1043, %v2363, 0
        %v2506 = vsel %vm1043, %v2365, 0
        %v2509 = vsel %vm1043, %v2367, 0
        %v2512 = vsel %vm1043, %v2369, 0
        %v2515 = vsel %vm1043, %v2371, 0
        %v2518 = vsel %vm1043, %v2373, 0
        %v2521 = vsel %vm1043, %v2375, 0
        %2523 = vmatpush.msra.mxu0 0.0
        %2524 = vmatpush.msra.mxu0 0.0
        %2525 = vmatpush.msra.mxu0 0.0
        %2526 = vmatpush.msra.mxu0 0.0
        %2527 = vmatpush.msra.mxu0 0.0
        %2528 = vmatpush.msra.mxu0 0.0
        %2529 = vmatpush.msra.mxu0 0.0
        %2530 = vmatpush.msra.mxu0 0.0
        %2531 = vmatpush.msra.mxu0 0.0
        %2532 = vmatpush.msra.mxu0 %v1857
        %2533 = vmatpush.msra.mxu0 %v1854
        %2534 = vmatpush.msra.mxu0 %v1851
        %2535 = vmatpush.msra.mxu0 %v1848
        %2536 = vmatpush.msra.mxu0 %v1845
        %2537 = vmatpush.msra.mxu0 %v1842
        %2538 = vmatpush.msra.mxu0 %v1839
        %2539 = vmatmul.f32.gmra.mxu0 %v2503
        %v2540 = vpop.f32.mrf.mxu0
        %v2541 = vadd.f32 0.0, %v2540
        %2542 = vmatmul.f32.gmra.mxu0 %v2506
        %v2543 = vpop.f32.mrf.mxu0
        %v2544 = vadd.f32 0.0, %v2543
        %2545 = vmatmul.f32.gmra.mxu0 %v2509
        %v2546 = vpop.f32.mrf.mxu0
        %v2547 = vadd.f32 0.0, %v2546
        %2548 = vmatmul.f32.gmra.mxu0 %v2512
        %v2549 = vpop.f32.mrf.mxu0
        %v2550 = vadd.f32 0.0, %v2549
        %2551 = vmatmul.f32.gmra.mxu0 %v2515
        %v2552 = vpop.f32.mrf.mxu0
        %v2553 = vadd.f32 0.0, %v2552
        %2554 = vmatmul.f32.gmra.mxu0 %v2518
        %v2555 = vpop.f32.mrf.mxu0
        %v2556 = vadd.f32 0.0, %v2555
        %2557 = vmatmul.f32.gmra.mxu0 %v2521
        %v2558 = vpop.f32.mrf.mxu0
        %v2559 = vadd.f32 0.0, %v2558
        %2560 = vdwg.mxu0
        %v2562 = vsel %vm1043, %v2377, 0
        %v2565 = vsel %vm1043, %v2379, 0
        %v2568 = vsel %vm1043, %v2381, 0
        %v2571 = vsel %vm1043, %v2383, 0
        %v2574 = vsel %vm1043, %v2385, 0
        %v2577 = vsel %vm1043, %v2387, 0
        %v2580 = vsel %vm1043, %v2389, 0
        %2582 = vmatpush.msra.mxu0 0.0
        %2583 = vmatpush.msra.mxu0 0.0
        %2584 = vmatpush.msra.mxu0 0.0
        %2585 = vmatpush.msra.mxu0 0.0
        %2586 = vmatpush.msra.mxu0 0.0
        %2587 = vmatpush.msra.mxu0 0.0
        %2588 = vmatpush.msra.mxu0 0.0
        %2589 = vmatpush.msra.mxu0 0.0
        %2590 = vmatpush.msra.mxu0 0.0
        %2591 = vmatpush.msra.mxu0 %v1878
        %2592 = vmatpush.msra.mxu0 %v1875
        %2593 = vmatpush.msra.mxu0 %v1872
        %2594 = vmatpush.msra.mxu0 %v1869
        %2595 = vmatpush.msra.mxu0 %v1866
        %2596 = vmatpush.msra.mxu0 %v1863
        %2597 = vmatpush.msra.mxu0 %v1860
        %2598 = vmatmul.f32.gmra.mxu0 %v2562
        %v2599 = vpop.f32.mrf.mxu0
        %v2600 = vadd.f32 0.0, %v2599
        %2601 = vmatmul.f32.gmra.mxu0 %v2565
        %v2602 = vpop.f32.mrf.mxu0
        %v2603 = vadd.f32 0.0, %v2602
        %2604 = vmatmul.f32.gmra.mxu0 %v2568
        %v2605 = vpop.f32.mrf.mxu0
        %v2606 = vadd.f32 0.0, %v2605
        %2607 = vmatmul.f32.gmra.mxu0 %v2571
        %v2608 = vpop.f32.mrf.mxu0
        %v2609 = vadd.f32 0.0, %v2608
        %2610 = vmatmul.f32.gmra.mxu0 %v2574
        %v2611 = vpop.f32.mrf.mxu0
        %v2612 = vadd.f32 0.0, %v2611
        %2613 = vmatmul.f32.gmra.mxu0 %v2577
        %v2614 = vpop.f32.mrf.mxu0
        %v2615 = vadd.f32 0.0, %v2614
        %2616 = vmatmul.f32.gmra.mxu0 %v2580
        %v2617 = vpop.f32.mrf.mxu0
        %v2618 = vadd.f32 0.0, %v2617
        %2619 = vdwg.mxu0
        %v2621 = vsel %vm1043, %v2391, 0
        %v2624 = vsel %vm1043, %v2393, 0
        %v2627 = vsel %vm1043, %v2395, 0
        %v2630 = vsel %vm1043, %v2397, 0
        %v2633 = vsel %vm1043, %v2399, 0
        %v2636 = vsel %vm1043, %v2401, 0
        %v2639 = vsel %vm1043, %v2403, 0
        %2641 = vmatpush.msra.mxu0 0.0
        %2642 = vmatpush.msra.mxu0 0.0
        %2643 = vmatpush.msra.mxu0 0.0
        %2644 = vmatpush.msra.mxu0 0.0
        %2645 = vmatpush.msra.mxu0 0.0
        %2646 = vmatpush.msra.mxu0 0.0
        %2647 = vmatpush.msra.mxu0 0.0
        %2648 = vmatpush.msra.mxu0 0.0
        %2649 = vmatpush.msra.mxu0 0.0
        %2650 = vmatpush.msra.mxu0 %v1899
        %2651 = vmatpush.msra.mxu0 %v1896
        %2652 = vmatpush.msra.mxu0 %v1893
        %2653 = vmatpush.msra.mxu0 %v1890
        %2654 = vmatpush.msra.mxu0 %v1887
        %2655 = vmatpush.msra.mxu0 %v1884
        %2656 = vmatpush.msra.mxu0 %v1881
        %2657 = vmatmul.f32.gmra.mxu0 %v2621
        %v2658 = vpop.f32.mrf.mxu0
        %v2659 = vadd.f32 0.0, %v2658
        %2660 = vmatmul.f32.gmra.mxu0 %v2624
        %v2661 = vpop.f32.mrf.mxu0
        %v2662 = vadd.f32 0.0, %v2661
        %2663 = vmatmul.f32.gmra.mxu0 %v2627
        %v2664 = vpop.f32.mrf.mxu0
        %v2665 = vadd.f32 0.0, %v2664
        %2666 = vmatmul.f32.gmra.mxu0 %v2630
        %v2667 = vpop.f32.mrf.mxu0
        %v2668 = vadd.f32 0.0, %v2667
        %2669 = vmatmul.f32.gmra.mxu0 %v2633
        %v2670 = vpop.f32.mrf.mxu0
        %v2671 = vadd.f32 0.0, %v2670
        %2672 = vmatmul.f32.gmra.mxu0 %v2636
        %v2673 = vpop.f32.mrf.mxu0
        %v2674 = vadd.f32 0.0, %v2673
        %2675 = vmatmul.f32.gmra.mxu0 %v2639
        %v2676 = vpop.f32.mrf.mxu0
        %v2677 = vadd.f32 0.0, %v2676
        %2678 = vdwg.mxu0
        %v2680 = vsel %vm1043, %v2405, 0
        %v2683 = vsel %vm1043, %v2407, 0
        %v2686 = vsel %vm1043, %v2409, 0
        %v2689 = vsel %vm1043, %v2411, 0
        %v2692 = vsel %vm1043, %v2413, 0
        %v2695 = vsel %vm1043, %v2415, 0
        %v2698 = vsel %vm1043, %v2417, 0
        %2700 = vmatpush.msra.mxu0 0.0
        %2701 = vmatpush.msra.mxu0 0.0
        %2702 = vmatpush.msra.mxu0 0.0
        %2703 = vmatpush.msra.mxu0 0.0
        %2704 = vmatpush.msra.mxu0 0.0
        %2705 = vmatpush.msra.mxu0 0.0
        %2706 = vmatpush.msra.mxu0 0.0
        %2707 = vmatpush.msra.mxu0 0.0
        %2708 = vmatpush.msra.mxu0 0.0
        %2709 = vmatpush.msra.mxu0 %v1920
        %2710 = vmatpush.msra.mxu0 %v1917
        %2711 = vmatpush.msra.mxu0 %v1914
        %2712 = vmatpush.msra.mxu0 %v1911
        %2713 = vmatpush.msra.mxu0 %v1908
        %2714 = vmatpush.msra.mxu0 %v1905
        %2715 = vmatpush.msra.mxu0 %v1902
        %2716 = vmatmul.f32.gmra.mxu0 %v2680
        %v2717 = vpop.f32.mrf.mxu0
        %v2718 = vadd.f32 0.0, %v2717
        %2719 = vmatmul.f32.gmra.mxu0 %v2683
        %v2720 = vpop.f32.mrf.mxu0
        %v2721 = vadd.f32 0.0, %v2720
        %2722 = vmatmul.f32.gmra.mxu0 %v2686
        %v2723 = vpop.f32.mrf.mxu0
        %v2724 = vadd.f32 0.0, %v2723
        %2725 = vmatmul.f32.gmra.mxu0 %v2689
        %v2726 = vpop.f32.mrf.mxu0
        %v2727 = vadd.f32 0.0, %v2726
        %2728 = vmatmul.f32.gmra.mxu0 %v2692
        %v2729 = vpop.f32.mrf.mxu0
        %v2730 = vadd.f32 0.0, %v2729
        %2731 = vmatmul.f32.gmra.mxu0 %v2695
        %v2732 = vpop.f32.mrf.mxu0
        %v2733 = vadd.f32 0.0, %v2732
        %2734 = vmatmul.f32.gmra.mxu0 %v2698
        %v2735 = vpop.f32.mrf.mxu0
        %v2736 = vadd.f32 0.0, %v2735
        %2737 = vdwg.mxu0
        %v2738 = vrcp.pop %v2420
        %v2739 = vrcp.pop %v2423
        %v2740 = vrcp.pop %v2426
        %v2741 = vrcp.pop %v2429
        %v2742 = vrcp.pop %v2432
        %v2743 = vrcp.pop %v2435
        %v2744 = vrcp.pop %v2438
        %v2745 = vrcp.pop %v2441
        %v2746 = vrcp.pop %v2444
        %v2747 = vrcp.pop %v2447
        %v2748 = vrcp.pop %v2450
        %v2749 = vrcp.pop %v2453
        %v2750 = vrcp.pop %v2456
        %v2751 = vrcp.pop %v2459
        %v2752 = vrcp.pop %v2462
        %v2753 = vrcp.pop %v2465
        %v2754 = vrcp.pop %v2468
        %v2755 = vrcp.pop %v2471
        %v2756 = vrcp.pop %v2474
        %v2757 = vrcp.pop %v2477
        %v2758 = vrcp.pop %v2480
        %v2759 = vrcp.pop %v2483
        %v2760 = vrcp.pop %v2486
        %v2761 = vrcp.pop %v2489
        %v2762 = vrcp.pop %v2492
        %v2763 = vrcp.pop %v2495
        %v2764 = vrcp.pop %v2498
        %v2765 = vrcp.pop %v2501
        %v2766 = vmul.f32 %v2541, %v2738
        %v2767 = vmul.f32 %v2544, %v2739
        %v2768 = vmul.f32 %v2547, %v2740
        %v2769 = vmul.f32 %v2550, %v2741
        %v2770 = vmul.f32 %v2553, %v2742
        %v2771 = vmul.f32 %v2556, %v2743
        %v2772 = vmul.f32 %v2559, %v2744
        %v2773 = vmul.f32 %v2600, %v2745
        %v2774 = vmul.f32 %v2603, %v2746
        %v2775 = vmul.f32 %v2606, %v2747
        %v2776 = vmul.f32 %v2609, %v2748
        %v2777 = vmul.f32 %v2612, %v2749
        %v2778 = vmul.f32 %v2615, %v2750
        %v2779 = vmul.f32 %v2618, %v2751
        %v2780 = vmul.f32 %v2659, %v2752
        %v2781 = vmul.f32 %v2662, %v2753
        %v2782 = vmul.f32 %v2665, %v2754
        %v2783 = vmul.f32 %v2668, %v2755
        %v2784 = vmul.f32 %v2671, %v2756
        %v2785 = vmul.f32 %v2674, %v2757
        %v2786 = vmul.f32 %v2677, %v2758
        %v2787 = vmul.f32 %v2718, %v2759
        %v2788 = vmul.f32 %v2721, %v2760
        %v2789 = vmul.f32 %v2724, %v2761
        %v2790 = vmul.f32 %v2727, %v2762
        %v2791 = vmul.f32 %v2730, %v2763
        %v2792 = vmul.f32 %v2733, %v2764
        %v2793 = vmul.f32 %v2736, %v2765
        %s2794 = scalar_lea.vmem %s4, 32
        %v2795 = vld [vmem:[%s2794] sm:$0xff]
        %v2796 = vld [vmem:[%s2794 + $0x8] sm:$0xff]
        %v2797 = vld [vmem:[%s2794 + $0x10] sm:$0xff]
        %v2798 = vld [vmem:[%s2794 + $0x18] sm:$0xff]
        %v2800 = vsel %vm722, %v2766, 0
        %v2803 = vsel %vm722, %v2767, 0
        %v2806 = vsel %vm722, %v2768, 0
        %v2809 = vsel %vm722, %v2769, 0
        %v2812 = vsel %vm722, %v2770, 0
        %v2815 = vsel %vm722, %v2771, 0
        %v2818 = vsel %vm722, %v2772, 0
        %v2821 = vsel %vm722, %v2773, 0
        %v2824 = vsel %vm722, %v2774, 0
        %v2827 = vsel %vm722, %v2775, 0
        %v2830 = vsel %vm722, %v2776, 0
        %v2833 = vsel %vm722, %v2777, 0
        %v2836 = vsel %vm722, %v2778, 0
        %v2839 = vsel %vm722, %v2779, 0
        %v2842 = vsel %vm722, %v2780, 0
        %v2845 = vsel %vm722, %v2781, 0
        %v2848 = vsel %vm722, %v2782, 0
        %v2851 = vsel %vm722, %v2783, 0
        %v2854 = vsel %vm722, %v2784, 0
        %v2857 = vsel %vm722, %v2785, 0
        %v2860 = vsel %vm722, %v2786, 0
        %v2863 = vsel %vm722, %v2787, 0
        %v2866 = vsel %vm722, %v2788, 0
        %v2869 = vsel %vm722, %v2789, 0
        %v2872 = vsel %vm722, %v2790, 0
        %v2875 = vsel %vm722, %v2791, 0
        %v2878 = vsel %vm722, %v2792, 0
        %v2881 = vsel %vm722, %v2793, 0
        %2883 = vmatpush.msra.mxu0 0.0
        %2884 = vmatpush.msra.mxu0 0.0
        %2885 = vmatpush.msra.mxu0 0.0
        %2886 = vmatpush.msra.mxu0 0.0
        %2887 = vmatpush.msra.mxu0 0.0
        %2888 = vmatpush.msra.mxu0 0.0
        %2889 = vmatpush.msra.mxu0 0.0
        %2890 = vmatpush.msra.mxu0 0.0
        %2891 = vmatpush.msra.mxu0 0.0
        %2892 = vmatpush.msra.mxu0 0.0
        %2893 = vmatpush.msra.mxu0 0.0
        %2894 = vmatpush.msra.mxu0 0.0
        %2895 = vmatpush.msra.mxu0 %v2798
        %2896 = vmatpush.msra.mxu0 %v2797
        %2897 = vmatpush.msra.mxu0 %v2796
        %2898 = vmatpush.msra.mxu0 %v2795
        %2899 = vmatmul.f32.gmra.mxu0 %v2800
        %v2900 = vpop.f32.mrf.mxu0
        %v2901 = vadd.f32 0.0, %v2900
        %2902 = vmatmul.f32.gmra.mxu0 %v2803
        %v2903 = vpop.f32.mrf.mxu0
        %v2904 = vadd.f32 0.0, %v2903
        %2905 = vmatmul.f32.gmra.mxu0 %v2806
        %v2906 = vpop.f32.mrf.mxu0
        %v2907 = vadd.f32 0.0, %v2906
        %2908 = vmatmul.f32.gmra.mxu0 %v2809
        %v2909 = vpop.f32.mrf.mxu0
        %v2910 = vadd.f32 0.0, %v2909
        %2911 = vmatmul.f32.gmra.mxu0 %v2812
        %v2912 = vpop.f32.mrf.mxu0
        %v2913 = vadd.f32 0.0, %v2912
        %2914 = vmatmul.f32.gmra.mxu0 %v2815
        %v2915 = vpop.f32.mrf.mxu0
        %v2916 = vadd.f32 0.0, %v2915
        %2917 = vmatmul.f32.gmra.mxu0 %v2818
        %v2918 = vpop.f32.mrf.mxu0
        %v2919 = vadd.f32 0.0, %v2918
        %2920 = vmatmul.f32.gmra.mxu0 %v2821
        %v2921 = vpop.f32.mrf.mxu0
        %v2922 = vadd.f32 0.0, %v2921
        %2923 = vmatmul.f32.gmra.mxu0 %v2824
        %v2924 = vpop.f32.mrf.mxu0
        %v2925 = vadd.f32 0.0, %v2924
        %2926 = vmatmul.f32.gmra.mxu0 %v2827
        %v2927 = vpop.f32.mrf.mxu0
        %v2928 = vadd.f32 0.0, %v2927
        %2929 = vmatmul.f32.gmra.mxu0 %v2830
        %v2930 = vpop.f32.mrf.mxu0
        %v2931 = vadd.f32 0.0, %v2930
        %2932 = vmatmul.f32.gmra.mxu0 %v2833
        %v2933 = vpop.f32.mrf.mxu0
        %v2934 = vadd.f32 0.0, %v2933
        %2935 = vmatmul.f32.gmra.mxu0 %v2836
        %v2936 = vpop.f32.mrf.mxu0
        %v2937 = vadd.f32 0.0, %v2936
        %2938 = vmatmul.f32.gmra.mxu0 %v2839
        %v2939 = vpop.f32.mrf.mxu0
        %v2940 = vadd.f32 0.0, %v2939
        %2941 = vmatmul.f32.gmra.mxu0 %v2842
        %v2942 = vpop.f32.mrf.mxu0
        %v2943 = vadd.f32 0.0, %v2942
        %2944 = vmatmul.f32.gmra.mxu0 %v2845
        %v2945 = vpop.f32.mrf.mxu0
        %v2946 = vadd.f32 0.0, %v2945
        %2947 = vmatmul.f32.gmra.mxu0 %v2848
        %v2948 = vpop.f32.mrf.mxu0
        %v2949 = vadd.f32 0.0, %v2948
        %2950 = vmatmul.f32.gmra.mxu0 %v2851
        %v2951 = vpop.f32.mrf.mxu0
        %v2952 = vadd.f32 0.0, %v2951
        %2953 = vmatmul.f32.gmra.mxu0 %v2854
        %v2954 = vpop.f32.mrf.mxu0
        %v2955 = vadd.f32 0.0, %v2954
        %2956 = vmatmul.f32.gmra.mxu0 %v2857
        %v2957 = vpop.f32.mrf.mxu0
        %v2958 = vadd.f32 0.0, %v2957
        %2959 = vmatmul.f32.gmra.mxu0 %v2860
        %v2960 = vpop.f32.mrf.mxu0
        %v2961 = vadd.f32 0.0, %v2960
        %2962 = vmatmul.f32.gmra.mxu0 %v2863
        %v2963 = vpop.f32.mrf.mxu0
        %v2964 = vadd.f32 0.0, %v2963
        %2965 = vmatmul.f32.gmra.mxu0 %v2866
        %v2966 = vpop.f32.mrf.mxu0
        %v2967 = vadd.f32 0.0, %v2966
        %2968 = vmatmul.f32.gmra.mxu0 %v2869
        %v2969 = vpop.f32.mrf.mxu0
        %v2970 = vadd.f32 0.0, %v2969
        %2971 = vmatmul.f32.gmra.mxu0 %v2872
        %v2972 = vpop.f32.mrf.mxu0
        %v2973 = vadd.f32 0.0, %v2972
        %2974 = vmatmul.f32.gmra.mxu0 %v2875
        %v2975 = vpop.f32.mrf.mxu0
        %v2976 = vadd.f32 0.0, %v2975
        %2977 = vmatmul.f32.gmra.mxu0 %v2878
        %v2978 = vpop.f32.mrf.mxu0
        %v2979 = vadd.f32 0.0, %v2978
        %2980 = vmatmul.f32.gmra.mxu0 %v2881
        %v2981 = vpop.f32.mrf.mxu0
        %v2982 = vadd.f32 0.0, %v2981
        %2983 = vdwg.mxu0
        %v2985 = vsel %vm722, %v1560, 0
        %v2988 = vsel %vm722, %v1561, 0
        %v2991 = vsel %vm722, %v1562, 0
        %v2994 = vsel %vm722, %v1563, 0
        %v2997 = vsel %vm722, %v1564, 0
        %v3000 = vsel %vm722, %v1565, 0
        %v3003 = vsel %vm722, %v1566, 0
        %v3006 = vsel %vm722, %v1567, 0
        %v3009 = vsel %vm722, %v1568, 0
        %v3012 = vsel %vm722, %v1569, 0
        %v3015 = vsel %vm722, %v1570, 0
        %v3018 = vsel %vm722, %v1571, 0
        %v3021 = vsel %vm722, %v1572, 0
        %v3024 = vsel %vm722, %v1573, 0
        %v3027 = vsel %vm722, %v1574, 0
        %v3030 = vsel %vm722, %v1575, 0
        %v3033 = vsel %vm722, %v1576, 0
        %v3036 = vsel %vm722, %v1577, 0
        %v3039 = vsel %vm722, %v1578, 0
        %v3042 = vsel %vm722, %v1579, 0
        %v3045 = vsel %vm722, %v1580, 0
        %v3048 = vsel %vm722, %v1581, 0
        %v3051 = vsel %vm722, %v1582, 0
        %v3054 = vsel %vm722, %v1583, 0
        %v3057 = vsel %vm722, %v1584, 0
        %v3060 = vsel %vm722, %v1585, 0
        %v3063 = vsel %vm722, %v1586, 0
        %v3066 = vsel %vm722, %v1587, 0
        %3068 = vmatpush.msra.mxu0 0.0
        %3069 = vmatpush.msra.mxu0 0.0
        %3070 = vmatpush.msra.mxu0 0.0
        %3071 = vmatpush.msra.mxu0 0.0
        %3072 = vmatpush.msra.mxu0 0.0
        %3073 = vmatpush.msra.mxu0 0.0
        %3074 = vmatpush.msra.mxu0 0.0
        %3075 = vmatpush.msra.mxu0 0.0
        %3076 = vmatpush.msra.mxu0 0.0
        %3077 = vmatpush.msra.mxu0 0.0
        %3078 = vmatpush.msra.mxu0 0.0
        %3079 = vmatpush.msra.mxu0 0.0
        %3080 = vmatpush.msra.mxu0 %v1591
        %3081 = vmatpush.msra.mxu0 %v1590
        %3082 = vmatpush.msra.mxu0 %v1589
        %3083 = vmatpush.msra.mxu0 %v1588
        %3084 = vmatmul.f32.gmra.mxu0 %v2985
        %v3085 = vpop.f32.mrf.mxu0
        %v3086 = vadd.f32 %v2901, %v3085
        %3087 = vmatmul.f32.gmra.mxu0 %v2988
        %v3088 = vpop.f32.mrf.mxu0
        %v3089 = vadd.f32 %v2904, %v3088
        %3090 = vmatmul.f32.gmra.mxu0 %v2991
        %v3091 = vpop.f32.mrf.mxu0
        %v3092 = vadd.f32 %v2907, %v3091
        %3093 = vmatmul.f32.gmra.mxu0 %v2994
        %v3094 = vpop.f32.mrf.mxu0
        %v3095 = vadd.f32 %v2910, %v3094
        %3096 = vmatmul.f32.gmra.mxu0 %v2997
        %v3097 = vpop.f32.mrf.mxu0
        %v3098 = vadd.f32 %v2913, %v3097
        %3099 = vmatmul.f32.gmra.mxu0 %v3000
        %v3100 = vpop.f32.mrf.mxu0
        %v3101 = vadd.f32 %v2916, %v3100
        %3102 = vmatmul.f32.gmra.mxu0 %v3003
        %v3103 = vpop.f32.mrf.mxu0
        %v3104 = vadd.f32 %v2919, %v3103
        %3105 = vmatmul.f32.gmra.mxu0 %v3006
        %v3106 = vpop.f32.mrf.mxu0
        %v3107 = vadd.f32 %v2922, %v3106
        %3108 = vmatmul.f32.gmra.mxu0 %v3009
        %v3109 = vpop.f32.mrf.mxu0
        %v3110 = vadd.f32 %v2925, %v3109
        %3111 = vmatmul.f32.gmra.mxu0 %v3012
        %v3112 = vpop.f32.mrf.mxu0
        %v3113 = vadd.f32 %v2928, %v3112
        %3114 = vmatmul.f32.gmra.mxu0 %v3015
        %v3115 = vpop.f32.mrf.mxu0
        %v3116 = vadd.f32 %v2931, %v3115
        %3117 = vmatmul.f32.gmra.mxu0 %v3018
        %v3118 = vpop.f32.mrf.mxu0
        %v3119 = vadd.f32 %v2934, %v3118
        %3120 = vmatmul.f32.gmra.mxu0 %v3021
        %v3121 = vpop.f32.mrf.mxu0
        %v3122 = vadd.f32 %v2937, %v3121
        %3123 = vmatmul.f32.gmra.mxu0 %v3024
        %v3124 = vpop.f32.mrf.mxu0
        %v3125 = vadd.f32 %v2940, %v3124
        %3126 = vmatmul.f32.gmra.mxu0 %v3027
        %v3127 = vpop.f32.mrf.mxu0
        %v3128 = vadd.f32 %v2943, %v3127
        %3129 = vmatmul.f32.gmra.mxu0 %v3030
        %v3130 = vpop.f32.mrf.mxu0
        %v3131 = vadd.f32 %v2946, %v3130
        %3132 = vmatmul.f32.gmra.mxu0 %v3033
        %v3133 = vpop.f32.mrf.mxu0
        %v3134 = vadd.f32 %v2949, %v3133
        %3135 = vmatmul.f32.gmra.mxu0 %v3036
        %v3136 = vpop.f32.mrf.mxu0
        %v3137 = vadd.f32 %v2952, %v3136
        %3138 = vmatmul.f32.gmra.mxu0 %v3039
        %v3139 = vpop.f32.mrf.mxu0
        %v3140 = vadd.f32 %v2955, %v3139
        %3141 = vmatmul.f32.gmra.mxu0 %v3042
        %v3142 = vpop.f32.mrf.mxu0
        %v3143 = vadd.f32 %v2958, %v3142
        %3144 = vmatmul.f32.gmra.mxu0 %v3045
        %v3145 = vpop.f32.mrf.mxu0
        %v3146 = vadd.f32 %v2961, %v3145
        %3147 = vmatmul.f32.gmra.mxu0 %v3048
        %v3148 = vpop.f32.mrf.mxu0
        %v3149 = vadd.f32 %v2964, %v3148
        %3150 = vmatmul.f32.gmra.mxu0 %v3051
        %v3151 = vpop.f32.mrf.mxu0
        %v3152 = vadd.f32 %v2967, %v3151
        %3153 = vmatmul.f32.gmra.mxu0 %v3054
        %v3154 = vpop.f32.mrf.mxu0
        %v3155 = vadd.f32 %v2970, %v3154
        %3156 = vmatmul.f32.gmra.mxu0 %v3057
        %v3157 = vpop.f32.mrf.mxu0
        %v3158 = vadd.f32 %v2973, %v3157
        %3159 = vmatmul.f32.gmra.mxu0 %v3060
        %v3160 = vpop.f32.mrf.mxu0
        %v3161 = vadd.f32 %v2976, %v3160
        %3162 = vmatmul.f32.gmra.mxu0 %v3063
        %v3163 = vpop.f32.mrf.mxu0
        %v3164 = vadd.f32 %v2979, %v3163
        %3165 = vmatmul.f32.gmra.mxu0 %v3066
        %v3166 = vpop.f32.mrf.mxu0
        %v3167 = vadd.f32 %v2982, %v3166
        %3168 = vdwg.mxu0
        %3169 = vst.msk [vmem:[%s272] sm:$0xff] %vm311, %v3086
        %3170 = vst.msk [vmem:[%s272 + $0x8] sm:$0xff] %vm311, %v3089
        %3171 = vst.msk [vmem:[%s272 + $0x10] sm:$0xff] %vm311, %v3092
        %3172 = vst.msk [vmem:[%s272 + $0x18] sm:$0xff] %vm311, %v3095
        %3173 = vst.msk [vmem:[%s272 + $0x20] sm:$0xff] %vm311, %v3098
        %3174 = vst.msk [vmem:[%s272 + $0x28] sm:$0xff] %vm311, %v3101
        %3175 = vst.msk [vmem:[%s272 + $0x30] sm:$0xff] %vm311, %v3104
        %3176 = vst.msk [vmem:[%s272 + $0x38] sm:$0xff] %vm311, %v3107
        %3177 = vst.msk [vmem:[%s272 + $0x40] sm:$0xff] %vm311, %v3110
        %3178 = vst.msk [vmem:[%s272 + $0x48] sm:$0xff] %vm311, %v3113
        %3179 = vst.msk [vmem:[%s272 + $0x50] sm:$0xff] %vm311, %v3116
        %3180 = vst.msk [vmem:[%s272 + $0x58] sm:$0xff] %vm311, %v3119
        %3181 = vst.msk [vmem:[%s272 + $0x60] sm:$0xff] %vm311, %v3122
        %3182 = vst.msk [vmem:[%s272 + $0x68] sm:$0xff] %vm311, %v3125
        %3183 = vst.msk [vmem:[%s272 + $0x70] sm:$0xff] %vm311, %v3128
        %3184 = vst.msk [vmem:[%s272 + $0x78] sm:$0xff] %vm311, %v3131
        %3185 = vst.msk [vmem:[%s272 + $0x80] sm:$0xff] %vm311, %v3134
        %3186 = vst.msk [vmem:[%s272 + $0x88] sm:$0xff] %vm311, %v3137
        %3187 = vst.msk [vmem:[%s272 + $0x90] sm:$0xff] %vm311, %v3140
        %3188 = vst.msk [vmem:[%s272 + $0x98] sm:$0xff] %vm311, %v3143
        %3189 = vst.msk [vmem:[%s272 + $0xa0] sm:$0xff] %vm311, %v3146
        %3190 = vst.msk [vmem:[%s272 + $0xa8] sm:$0xff] %vm311, %v3149
        %3191 = vst.msk [vmem:[%s272 + $0xb0] sm:$0xff] %vm311, %v3152
        %3192 = vst.msk [vmem:[%s272 + $0xb8] sm:$0xff] %vm311, %v3155
        %3193 = vst.msk [vmem:[%s272 + $0xc0] sm:$0xff] %vm311, %v3158
        %3194 = vst.msk [vmem:[%s272 + $0xc8] sm:$0xff] %vm311, %v3161
        %3195 = vst.msk [vmem:[%s272 + $0xd0] sm:$0xff] %vm311, %v3164
        %3196 = vst.msk [vmem:[%s272 + $0xd8] sm:$0xff] %vm311, %v3167
        %s3197 = sand.u32 %s162, 1
        %s3198 = scalar_lea.sflag [#allocation4], %s3197
        %s3199 = sand.u32 %s162, 1
        %s3200 = smul.addr %s3199, 224
        %s3201 = scalar_lea.vmem [#allocation5], %s3200
        // Predicated region
        $region49: #{tpu_custom_call.1} parent=43 // pred_check
          %p3202 = pneg %p172
        $region50: #{tpu_custom_call.1} parent=43 // pred_check_branch
          %3204 = sbr.rel (%p3202) target = $region52
        $region51: #{tpu_custom_call.1} parent=43 // pred_region
          %s3205 = smul.u32 4, %s23
          %3207 = vsyncadd %s3198, 0
          %s3208 = smul.addr %s3205, 7
          %s3209 = smul.addr %s3208, 8
          %s3210 = scalar_lea.hbm %s6, %s3209
          %s3211 = sshll.u32 %s3201, 4
          %s3212 = int_to_ptr.vmem [resolvable:$true] %s3211
          %s3213 = sshll.u32 %s3210, 4
          %s3214 = int_to_ptr.hbm [resolvable:$true] %s3213
          %3219 = dma.vmem_to_hbm [thread:$0]  %s3212, 3584, %s3214, %s3198, 128, 128, 8
        $region52: #{tpu_custom_call.1} parent=43 // pred_fallthru
          _
      $region44: #{tpu_custom_call.1} parent=5 // pred_fallthru
        _
      %p3220 = scmp.le.s32.totalorder 2, %s18
      // Predicated region
      $region53: #{tpu_custom_call.1} parent=5 // pred_check
        %p3221 = pneg %p3220
      $region54: #{tpu_custom_call.1} parent=5 // pred_check_branch
        %3223 = sbr.rel (%p3221) target = $region56
      $region55: #{tpu_custom_call.1} parent=5 // pred_region
        %s3224 = ssub.s32 %s18, 2
        // Predicated region
        $region57: #{tpu_custom_call.1} parent=55 // pred_check
          %p3225 = pneg %p178
        $region58: #{tpu_custom_call.1} parent=55 // pred_check_branch
          %3227 = sbr.rel (%p3225) target = $region60
        $region59: #{tpu_custom_call.1} parent=55 // pred_region
          %s3228 = sand.u32 %s163, 1
          %s3229 = scalar_lea.sflag [#allocation4], %s3228
          %s3230 = sand.u32 %s163, 1
          %s3231 = smul.addr %s3230, 224
          %s3232 = scalar_lea.vmem [#allocation5], %s3231
          %3234 = dma.done %s3229, 3584
        $region60: #{tpu_custom_call.1} parent=55 // pred_fallthru
          _
      $region56: #{tpu_custom_call.1} parent=5 // pred_fallthru
        _
    $region6: #{tpu_custom_call.1} parent=1 // loop_footer
      %s22 = sadd.s32 1, %s18
    $region7: #{tpu_custom_call.1} parent=1 // loop_footer_branch
      %17 = sbr.rel target = $region3
    $region8: #{tpu_custom_call.1} parent=1 // loop_exit
      _
    %3235 = vsyncpa [#allocation3], 1
    %s3236 = scalar_lea.sflag [#allocation3], 1
    %3237 = vsyncpa %s3236, 1
    %3238 = vsyncpa [#allocation4], 1
    %s3239 = scalar_lea.sflag [#allocation4], 1
    %3240 = vsyncpa %s3239, 1

</llo_original>
